<compile_context>
chip_gen: v7x
topology: tpu7x:2x2x1
jax: 0.10.0
libtpu: 0.0.40
codegen_flags: <defaults>
</compile_context>

<pallas_src>
import jax
import jax.numpy as jnp
from jax import lax
from jax.experimental import pallas as pl
from jax.experimental.pallas import tpu as pltpu

# TODO(synk): COUNT_NORM_FACTOR is defined elsewhere in the original repo; the
#             exact value is not shipped here.
COUNT_NORM_FACTOR = 0.1

# ---- sizes (small, consistent with the module) ----
BS = 2             # batch
N_AGENTS = 4       # args.n_agents
N_NONAGENT = 8     # non-agent entities
N_ENTITIES = N_AGENTS + N_NONAGENT
N_TASKS = 8        # args.n_tasks
IN_DIM = 16        # entity feature dim (input_shape)
D = 32             # args.attn_embed_dim

P_IN = IN_DIM + N_TASKS       # fused fc1 + task_embed input width (24)
NEG = -1e30                   # large-negative mask value (finite after +gumbel)

# row offsets inside the packed weight slab
_W_PRO = 0                    # [w1; wt]          rows   0:24
_W_O = P_IN                   # wo                rows  24:56
_W_UTE = _W_O + D             # uw[:D]  (te half) rows  56:88
_W_UAG = _W_UTE + D           # uw[D:]  (ag half) rows  88:120
_W_B = _W_UAG + D             # b1,bo,cb,ub,cw0,cw1 rows 120:126
W_ROWS = _W_B + 6


# ---------------------------------------------------------------------------
# Single fused kernel: fc1+task_embed -> non-agent attention -> task
# aggregation -> autoregressive pointer-net allocation loop.
# ---------------------------------------------------------------------------
def fused_alloc_kernel(x_ref, wbig_ref, wqkv_ref, bd_ref, ak_ref, misc_ref,
                       out_ref):
    f32, bf16 = jnp.float32, jnp.bfloat16
    inv_scale = 1.0 / jnp.sqrt(f32(D))

    wbig = wbig_ref[...]
    w_pro = wbig[_W_PRO:_W_PRO + P_IN, :]            # fc1 | task_embed
    wo = wbig[_W_O:_W_O + D, :]                      # attn out_trans
    uw_te = wbig[_W_UTE:_W_UTE + D, :].astype(bf16)  # embed_update (te half)
    uw_ag = wbig[_W_UAG:_W_UAG + D, :]               # embed_update (agent half)
    b1 = wbig[_W_B + 0:_W_B + 1, :]
    bo = wbig[_W_B + 1:_W_B + 2, :]
    cb = wbig[_W_B + 2:_W_B + 3, :]
    ub = wbig[_W_B + 3:_W_B + 4, :]
    cw0 = wbig[_W_B + 4:_W_B + 5, :]
    cw1 = wbig[_W_B + 5:_W_B + 6, :]

    # ---- fused fc1 + task_embed for ALL entities: ONE matmul ---------------
    # TODO(synk): TaskEmbedder source not provided; approximated as a bias-free
    #             linear embedding of the (n_tasks,) assignment vector.
    x_all = jnp.dot(x_ref[...].astype(bf16), w_pro.astype(bf16),
                    preferred_element_type=f32) + b1           # (BS*NE, D)
    x1_ag = x_all[0:BS * N_AGENTS, :]                          # (8, D)  agent-major rows
    x1_na = x_all[BS * N_AGENTS:, :]                           # (16, D) batch-major rows

    # ---- EntityAttentionLayer over non-agent entities (both batch elems in
    #      one (bs*nn, D) block, block-diagonal attention mask) --------------
    h = jnp.maximum(x1_na, 0.0).astype(bf16)                   # F.relu(nonagent_x1)
    qkv = jnp.dot(h, wqkv_ref[...].astype(bf16),
                  preferred_element_type=f32)                  # fused QKV (16, 3D)
    q = qkv[:, 0:D].astype(bf16)
    k = qkv[:, D:2 * D].astype(bf16)
    v = qkv[:, 2 * D:3 * D].astype(bf16)
    ak = ak_ref[...]
    allow = ak[:, 0:BS * N_NONAGENT]                           # 1 = may attend
    keep = ak[:, BS * N_NONAGENT:BS * N_NONAGENT + 1]          # 1 = entity alive
    sc = lax.dot_general(q, k, (((1,), (1,)), ((), ())),
                         preferred_element_type=f32) * inv_scale
    sc = jnp.where(allow > 0, sc, NEG)
    e = jnp.exp(sc - jnp.max(sc, axis=-1, keepdims=True)) * allow
    den = jnp.sum(e, axis=-1, keepdims=True)
    wgt = (e / (den + (den == 0).astype(f32))).astype(bf16)    # all-masked rows -> 0
    attn = jnp.dot(wgt, v, preferred_element_type=f32)
    attn = jnp.dot(attn.astype(bf16), wo.astype(bf16),
                   preferred_element_type=f32) + bo
    attn = attn * keep                                         # post mask

    # ---- task aggregation: flat block-diag matmul (replaces batched einsum)
    bd = bd_ref[...]                                           # (BS*NT, BS*NN)
    te_flat = jnp.dot(bd.astype(bf16), attn.astype(bf16),
                      preferred_element_type=f32)              # (BS*NT, D)
    nonag_cnt = jnp.sum(bd, axis=-1, keepdims=True) * COUNT_NORM_FACTOR
    count_base = nonag_cnt * cw0 + cb                          # loop-invariant count_embed

    te = te_flat.reshape(BS, N_TASKS, D)
    keys = (te_flat + count_base).reshape(BS, N_TASKS, D)      # task_ag counter starts at 0

    # ---- loop-invariant pieces, hoisted off the serial chain ----------------
    misc = misc_ref[...]
    gr = BS * N_AGENTS
    gum = misc[0:gr, :]                                        # (NA*BS, NT) gumbel noise
    tmask = misc[gr:gr + BS, :]                                # (BS, NT)  1 = task masked
    amask = misc[gr + BS:gr + 2 * BS, 0:N_AGENTS]              # (BS, NA)  1 = agent masked
    iota2 = lax.broadcasted_iota(jnp.int32, (BS, N_TASKS), 1)
    iota3 = lax.broadcasted_iota(jnp.int32, (BS, N_TASKS, 1), 1)
    cw1_cnf = (cw1 * COUNT_NORM_FACTOR).reshape(1, 1, D)
    # agent half of embed_update for all agents at once
    agp = jnp.dot(jnp.maximum(x1_ag, 0.0).astype(bf16), uw_ag.astype(bf16),
                  preferred_element_type=f32) + ub             # (NA*BS, D)

    # ---- autoregressive allocation loop, vectorized over the batch ---------
    hard_rows = []
    for ai in range(N_AGENTS):                                 # static unroll, serial chain
        cur_ag = x1_ag[ai * BS:(ai + 1) * BS, :]               # (BS, D) agent_embeds
        # pointer logits: VPU multiply + XLU lane reduce (no MXU on the chain)
        logits = jnp.sum(keys * cur_ag[:, None, :], axis=-1) * inv_scale   # (BS, NT)
        # RelaxedOneHotCategorical(temp=1).rsample(); straight-through forward
        # value == one_hot(argmax(masked_logits + gumbel)).
        y = jnp.where(tmask > 0, NEG, logits) + gum[ai * BS:(ai + 1) * BS, :]
        idx = jnp.argmax(y, axis=-1, keepdims=True)            # (BS, 1)
        cur_keep = 1.0 - amask[:, ai:ai + 1]                   # (BS, 1), 0 if agent masked
        hard = (iota2 == idx).astype(f32) * cur_keep           # (BS, NT)
        hard_rows.append(hard)
        if ai < N_AGENTS - 1:                                  # last update is never read
            hard_col = (iota3 == idx[:, :, None]).astype(f32) * cur_keep[:, :, None]
            # embed_update(relu(cat([te, cur_ag]))) split into two matmuls;
            # agent half is the hoisted `agp`.
            upd = jnp.dot(
                jnp.maximum(te, 0.0).reshape(BS * N_TASKS, D).astype(bf16),
                uw_te, preferred_element_type=f32).reshape(BS, N_TASKS, D)
            upd = upd + agp[ai * BS:(ai + 1) * BS, :][:, None, :]
            te = te + hard_col * upd                           # sel_task_upd=True path
            keys = keys + hard_col * (upd + cw1_cnf)           # incremental count_embed

    out_ref[...] = jnp.stack(hard_rows, axis=0)                # ONE store, (NA, BS, NT)


# ---------------------------------------------------------------------------
# Wrapper: layout plumbing (slab packing / block-diag masks / gumbel noise) +
# the single pallas_call.
# ---------------------------------------------------------------------------
@jax.jit
def alloc_policy_forward(params, batch, sample_key):
    entities = batch['entities']                       # (bs, ne, in_dim)
    entity_mask = batch['entity_mask']                 # (bs, ne)
    e2t_mask = batch['entity2task_mask']               # (bs, ne, nt)
    last_alloc = batch['last_alloc']                   # (bs, na, nt)
    task_mask = batch['task_mask']                     # (bs, nt)

    nag = N_AGENTS
    # fused fc1+task_embed input: agent rows (agent-major) then non-agent rows
    ag_rows = jnp.concatenate([entities[:, :nag], last_alloc], axis=-1)
    ag_rows = jnp.transpose(ag_rows, (1, 0, 2)).reshape(nag * BS, P_IN)
    e2t_na = 1.0 - e2t_mask[:, nag:]                   # (bs, nn, nt)
    na_rows = jnp.concatenate([entities[:, nag:], e2t_na], axis=-1)
    na_rows = na_rows.reshape(BS * N_NONAGENT, P_IN)
    x_in = jnp.concatenate([ag_rows, na_rows], axis=0)          # (BS*NE, P_IN)

    # block-diagonal "may attend" mask + keep column (post mask)
    keep_c = (1.0 - entity_mask[:, nag:]).reshape(BS * N_NONAGENT, 1)
    block_diag = jnp.kron(jnp.eye(BS, dtype=jnp.float32),
                          jnp.ones((N_NONAGENT, N_NONAGENT), jnp.float32))
    allow = keep_c * keep_c.T * block_diag
    allow_keep = jnp.concatenate([allow, keep_c], axis=1)        # (BS*NN, BS*NN+1)

    # block-diagonal entity2task aggregation matrix (BS*NT, BS*NN)
    e2t_naT = jnp.swapaxes(e2t_na, 1, 2)                         # (bs, nt, nn)
    bd = (e2t_naT[:, :, None, :] *
          jnp.eye(BS, dtype=jnp.float32)[:, None, :, None]
          ).reshape(BS * N_TASKS, BS * N_NONAGENT)

    # packed weight slabs
    w_big = jnp.concatenate([params['w1'], params['wt'], params['wo'],
                             params['uw'], params['b1'], params['bo'],
                             params['cb'], params['ub'], params['cw']],
                            axis=0)                              # (126, D)
    wqkv = jnp.concatenate([params['wq'], params['wk'], params['wv']],
                           axis=1)                               # (D, 3D)

    # gumbel noise (in wrapper: pltpu PRNG has no interpret/CPU path) + masks
    gum = jax.random.gumbel(sample_key, (N_AGENTS * BS, N_TASKS), jnp.float32)
    amask_pad = jnp.pad(entity_mask[:, :nag], ((0, 0), (0, N_TASKS - N_AGENTS)))
    misc = jnp.concatenate([gum, task_mask, amask_pad], axis=0)  # (NA*BS+2*BS, NT)

    # NOTE: no grid — whole batch per call.  For larger batches (esp. v7x's
    # two TensorCores) add a leading grid over batch chunks with
    # dimension_semantics=("parallel",).
    out = pl.pallas_call(
        fused_alloc_kernel,
        out_shape=jax.ShapeDtypeStruct((N_AGENTS, BS, N_TASKS), jnp.float32),
        in_specs=[pl.BlockSpec(memory_space=pltpu.MemorySpace.VMEM)] * 6,
        out_specs=pl.BlockSpec(memory_space=pltpu.MemorySpace.VMEM),
    )(x_in, w_big, wqkv, bd, allow_keep, misc)
    return jnp.transpose(out, (1, 0, 2))                         # (bs, na, nt)


# ---------------------------------------------------------------------------
# Parameter init (plain JAX).
# ---------------------------------------------------------------------------
def make_params(key):
    ks = jax.random.split(key, 12)

    def lin(k, fan_in, shape):
        return jax.random.uniform(k, shape, jnp.float32, -1.0, 1.0) / jnp.sqrt(
            jnp.float32(fan_in))

    return {
        'w1': lin(ks[0], IN_DIM, (IN_DIM, D)),        # fc1 (transposed)
        'b1': lin(ks[1], IN_DIM, (1, D)),
        'wt': lin(ks[2], N_TASKS, (N_TASKS, D)),      # TaskEmbedder (see TODO)
        'wq': lin(ks[3], D, (D, D)),                  # EntityAttentionLayer in_trans
        'wk': lin(ks[4], D, (D, D)),
        'wv': lin(ks[5], D, (D, D)),
        'wo': lin(ks[6], D, (D, D)),                  # out_trans
        'bo': lin(ks[7], D, (1, D)),
        'cw': lin(ks[8], 2, (2, D)),                  # count_embed (transposed)
        'cb': lin(ks[9], 2, (1, D)),
        'uw': lin(ks[10], 2 * D, (2 * D, D)),         # embed_update (transposed)
        'ub': lin(ks[11], 2 * D, (1, D)),
    }


if __name__ == "__main__":
    key = jax.random.PRNGKey(0)
    kp, ke, km, ka, kg = jax.random.split(key, 5)
    params = make_params(kp)

    entities = jax.random.normal(ke, (BS, N_ENTITIES, IN_DIM), jnp.float32)
    entity_mask = jnp.zeros((BS, N_ENTITIES), jnp.float32)
    entity_mask = entity_mask.at[0, N_AGENTS - 1].set(1.0)    # mask one agent
    entity_mask = entity_mask.at[1, N_ENTITIES - 1].set(1.0)  # mask one non-agent
    entity2task_mask = (jax.random.uniform(km, (BS, N_ENTITIES, N_TASKS))
                        > 0.5).astype(jnp.float32)
    last_alloc = jax.nn.one_hot(
        jax.random.randint(ka, (BS, N_AGENTS), 0, N_TASKS), N_TASKS,
        dtype=jnp.float32)
    task_mask = jnp.zeros((BS, N_TASKS), jnp.float32).at[1, N_TASKS - 1].set(1.0)

    batch = dict(entities=entities, entity_mask=entity_mask,
                 entity2task_mask=entity2task_mask, last_alloc=last_alloc,
                 task_mask=task_mask)

    allocs = alloc_policy_forward(params, batch, kg)
    allocs = jax.block_until_ready(allocs)

    assert allocs.shape == (BS, N_AGENTS, N_TASKS)
    assert bool(jnp.all(jnp.isfinite(allocs)))
    row_sums = jnp.sum(allocs, axis=-1)
    # unmasked agents pick exactly one task; masked agents get an all-zero row
    assert bool(jnp.all((row_sums == 1.0) | (row_sums == 0.0)))
    assert bool(jnp.all(allocs[0, N_AGENTS - 1] == 0.0))      # masked agent
    assert bool(jnp.all(allocs[1, :, N_TASKS - 1] == 0.0))    # masked task never chosen
    print("KERNEL_OK")
</pallas_src>

<mosaic_0001>
module attributes {stable_mosaic.version = 11 : i64} {
  func.func @fused_alloc_kernel(%arg0: memref<24x24xf32, #tpu.memory_space<vmem>>, %arg1: memref<126x32xf32, #tpu.memory_space<vmem>>, %arg2: memref<32x96xf32, #tpu.memory_space<vmem>>, %arg3: memref<16x16xf32, #tpu.memory_space<vmem>>, %arg4: memref<16x17xf32, #tpu.memory_space<vmem>>, %arg5: memref<12x8xf32, #tpu.memory_space<vmem>>, %arg6: memref<4x2x8xf32, #tpu.memory_space<vmem>>) attributes {dimension_semantics = [], scalar_prefetch = 0 : i64, scratch_operands = 0 : i64, tpu.core_type = #tpu.core_type<tc>} {
    %cst = arith.constant 3.200000e+01 : f32
    %0 = math.sqrt %cst : f32
    %cst_0 = arith.constant 1.000000e+00 : f32
    %1 = arith.divf %cst_0, %0 : f32
    %c0 = arith.constant 0 : index
    %c0_1 = arith.constant 0 : index
    %2 = vector.load %arg1[%c0, %c0_1] : memref<126x32xf32, #tpu.memory_space<vmem>>, vector<126x32xf32>
    %3 = vector.extract_strided_slice %2 {offsets = [0, 0], sizes = [24, 32], strides = [1, 1]} : vector<126x32xf32> to vector<24x32xf32>
    %4 = vector.extract_strided_slice %2 {offsets = [24, 0], sizes = [32, 32], strides = [1, 1]} : vector<126x32xf32> to vector<32x32xf32>
    %5 = vector.extract_strided_slice %2 {offsets = [56, 0], sizes = [32, 32], strides = [1, 1]} : vector<126x32xf32> to vector<32x32xf32>
    %6 = arith.truncf %5 : vector<32x32xf32> to vector<32x32xbf16>
    %7 = vector.extract_strided_slice %2 {offsets = [88, 0], sizes = [32, 32], strides = [1, 1]} : vector<126x32xf32> to vector<32x32xf32>
    %8 = vector.extract_strided_slice %2 {offsets = [120, 0], sizes = [1, 32], strides = [1, 1]} : vector<126x32xf32> to vector<1x32xf32>
    %9 = vector.extract_strided_slice %2 {offsets = [121, 0], sizes = [1, 32], strides = [1, 1]} : vector<126x32xf32> to vector<1x32xf32>
    %10 = vector.extract_strided_slice %2 {offsets = [122, 0], sizes = [1, 32], strides = [1, 1]} : vector<126x32xf32> to vector<1x32xf32>
    %11 = vector.extract_strided_slice %2 {offsets = [123, 0], sizes = [1, 32], strides = [1, 1]} : vector<126x32xf32> to vector<1x32xf32>
    %12 = vector.extract_strided_slice %2 {offsets = [124, 0], sizes = [1, 32], strides = [1, 1]} : vector<126x32xf32> to vector<1x32xf32>
    %13 = vector.extract_strided_slice %2 {offsets = [125, 0], sizes = [1, 32], strides = [1, 1]} : vector<126x32xf32> to vector<1x32xf32>
    %c0_2 = arith.constant 0 : index
    %c0_3 = arith.constant 0 : index
    %14 = vector.load %arg0[%c0_2, %c0_3] : memref<24x24xf32, #tpu.memory_space<vmem>>, vector<24x24xf32>
    %15 = arith.truncf %14 : vector<24x24xf32> to vector<24x24xbf16>
    %16 = arith.truncf %3 : vector<24x32xf32> to vector<24x32xbf16>
    %cst_4 = arith.constant dense<0.000000e+00> : vector<24x32xf32>
    %17 = tpu.matmul %15, %16, %cst_4 {dimension_numbers = #tpu.dot_dimension_numbers<[1], [0], [0], [1], [0, 0, 1, 1], [], []>} : vector<24x24xbf16>, vector<24x32xbf16>, vector<24x32xf32> -> vector<24x32xf32>
    %18 = vector.broadcast %8 : vector<1x32xf32> to vector<24x32xf32>
    %19 = arith.addf %17, %18 : vector<24x32xf32>
    %20 = vector.extract_strided_slice %19 {offsets = [0, 0], sizes = [8, 32], strides = [1, 1]} : vector<24x32xf32> to vector<8x32xf32>
    %21 = vector.extract_strided_slice %19 {offsets = [8, 0], sizes = [16, 32], strides = [1, 1]} : vector<24x32xf32> to vector<16x32xf32>
    %cst_5 = arith.constant 0.000000e+00 : f32
    %22 = vector.broadcast %cst_5 : f32 to vector<16x32xf32>
    %23 = arith.maximumf %21, %22 : vector<16x32xf32>
    %24 = arith.truncf %23 : vector<16x32xf32> to vector<16x32xbf16>
    %c0_6 = arith.constant 0 : index
    %c0_7 = arith.constant 0 : index
    %25 = vector.load %arg2[%c0_6, %c0_7] : memref<32x96xf32, #tpu.memory_space<vmem>>, vector<32x96xf32>
    %26 = arith.truncf %25 : vector<32x96xf32> to vector<32x96xbf16>
    %cst_8 = arith.constant dense<0.000000e+00> : vector<16x96xf32>
    %27 = tpu.matmul %24, %26, %cst_8 {dimension_numbers = #tpu.dot_dimension_numbers<[1], [0], [0], [1], [0, 0, 1, 1], [], []>} : vector<16x32xbf16>, vector<32x96xbf16>, vector<16x96xf32> -> vector<16x96xf32>
    %28 = vector.extract_strided_slice %27 {offsets = [0, 0], sizes = [16, 32], strides = [1, 1]} : vector<16x96xf32> to vector<16x32xf32>
    %29 = arith.truncf %28 : vector<16x32xf32> to vector<16x32xbf16>
    %30 = vector.extract_strided_slice %27 {offsets = [0, 32], sizes = [16, 32], strides = [1, 1]} : vector<16x96xf32> to vector<16x32xf32>
    %31 = arith.truncf %30 : vector<16x32xf32> to vector<16x32xbf16>
    %32 = vector.extract_strided_slice %27 {offsets = [0, 64], sizes = [16, 32], strides = [1, 1]} : vector<16x96xf32> to vector<16x32xf32>
    %33 = arith.truncf %32 : vector<16x32xf32> to vector<16x32xbf16>
    %c0_9 = arith.constant 0 : index
    %c0_10 = arith.constant 0 : index
    %34 = vector.load %arg4[%c0_9, %c0_10] : memref<16x17xf32, #tpu.memory_space<vmem>>, vector<16x17xf32>
    %35 = vector.extract_strided_slice %34 {offsets = [0, 0], sizes = [16, 16], strides = [1, 1]} : vector<16x17xf32> to vector<16x16xf32>
    %36 = vector.extract_strided_slice %34 {offsets = [0, 16], sizes = [16, 1], strides = [1, 1]} : vector<16x17xf32> to vector<16x1xf32>
    %cst_11 = arith.constant dense<0.000000e+00> : vector<16x16xf32>
    %37 = tpu.matmul %29, %31, %cst_11 {dimension_numbers = #tpu.dot_dimension_numbers<[1], [1], [0], [0], [0, 0, 1, 0], [], []>} : vector<16x32xbf16>, vector<16x32xbf16>, vector<16x16xf32> -> vector<16x16xf32>
    %38 = vector.broadcast %1 : f32 to vector<16x16xf32>
    %39 = arith.mulf %37, %38 : vector<16x16xf32>
    %cst_12 = arith.constant 0.000000e+00 : f32
    %40 = vector.broadcast %cst_12 : f32 to vector<16x16xf32>
    %41 = arith.cmpf ogt, %35, %40 : vector<16x16xf32>
    %cst_13 = arith.constant -1.000000e+30 : f32
    %42 = vector.broadcast %cst_13 : f32 to vector<16x16xf32>
    %43 = arith.select %41, %39, %42 : vector<16x16xi1>, vector<16x16xf32>
    %cst_14 = arith.constant dense<0xFF800000> : vector<16xf32>
    %44 = vector.multi_reduction <maximumf>, %43, %cst_14 [1] : vector<16x16xf32> to vector<16xf32>
    %45 = vector.shape_cast %44 : vector<16xf32> to vector<16x1xf32>
    %46 = vector.broadcast %45 : vector<16x1xf32> to vector<16x16xf32>
    %47 = arith.subf %43, %46 : vector<16x16xf32>
    %48 = math.exp %47 : vector<16x16xf32>
    %49 = arith.mulf %48, %35 : vector<16x16xf32>
    %cst_15 = arith.constant dense<0.000000e+00> : vector<16xf32>
    %50 = vector.multi_reduction <add>, %49, %cst_15 [1] : vector<16x16xf32> to vector<16xf32>
    %51 = vector.shape_cast %50 : vector<16xf32> to vector<16x1xf32>
    %cst_16 = arith.constant 0.000000e+00 : f32
    %52 = vector.broadcast %cst_16 : f32 to vector<16x1xf32>
    %53 = arith.cmpf oeq, %51, %52 : vector<16x1xf32>
    %54 = arith.extui %53 : vector<16x1xi1> to vector<16x1xi32>
    %55 = arith.sitofp %54 : vector<16x1xi32> to vector<16x1xf32>
    %56 = arith.addf %51, %55 : vector<16x1xf32>
    %57 = vector.broadcast %56 : vector<16x1xf32> to vector<16x16xf32>
    %58 = arith.divf %49, %57 : vector<16x16xf32>
    %59 = arith.truncf %58 : vector<16x16xf32> to vector<16x16xbf16>
    %cst_17 = arith.constant dense<0.000000e+00> : vector<16x32xf32>
    %60 = tpu.matmul %59, %33, %cst_17 {dimension_numbers = #tpu.dot_dimension_numbers<[1], [0], [0], [1], [0, 0, 1, 1], [], []>} : vector<16x16xbf16>, vector<16x32xbf16>, vector<16x32xf32> -> vector<16x32xf32>
    %61 = arith.truncf %60 : vector<16x32xf32> to vector<16x32xbf16>
    %62 = arith.truncf %4 : vector<32x32xf32> to vector<32x32xbf16>
    %cst_18 = arith.constant dense<0.000000e+00> : vector<16x32xf32>
    %63 = tpu.matmul %61, %62, %cst_18 {dimension_numbers = #tpu.dot_dimension_numbers<[1], [0], [0], [1], [0, 0, 1, 1], [], []>} : vector<16x32xbf16>, vector<32x32xbf16>, vector<16x32xf32> -> vector<16x32xf32>
    %64 = vector.broadcast %9 : vector<1x32xf32> to vector<16x32xf32>
    %65 = arith.addf %63, %64 : vector<16x32xf32>
    %66 = vector.broadcast %36 : vector<16x1xf32> to vector<16x32xf32>
    %67 = arith.mulf %65, %66 : vector<16x32xf32>
    %c0_19 = arith.constant 0 : index
    %c0_20 = arith.constant 0 : index
    %68 = vector.load %arg3[%c0_19, %c0_20] : memref<16x16xf32, #tpu.memory_space<vmem>>, vector<16x16xf32>
    %69 = arith.truncf %68 : vector<16x16xf32> to vector<16x16xbf16>
    %70 = arith.truncf %67 : vector<16x32xf32> to vector<16x32xbf16>
    %cst_21 = arith.constant dense<0.000000e+00> : vector<16x32xf32>
    %71 = tpu.matmul %69, %70, %cst_21 {dimension_numbers = #tpu.dot_dimension_numbers<[1], [0], [0], [1], [0, 0, 1, 1], [], []>} : vector<16x16xbf16>, vector<16x32xbf16>, vector<16x32xf32> -> vector<16x32xf32>
    %cst_22 = arith.constant dense<0.000000e+00> : vector<16xf32>
    %72 = vector.multi_reduction <add>, %68, %cst_22 [1] : vector<16x16xf32> to vector<16xf32>
    %73 = vector.shape_cast %72 : vector<16xf32> to vector<16x1xf32>
    %cst_23 = arith.constant 1.000000e-01 : f32
    %74 = vector.broadcast %cst_23 : f32 to vector<16x1xf32>
    %75 = arith.mulf %73, %74 : vector<16x1xf32>
    %76 = vector.broadcast %75 : vector<16x1xf32> to vector<16x32xf32>
    %77 = vector.broadcast %12 : vector<1x32xf32> to vector<16x32xf32>
    %78 = arith.mulf %76, %77 : vector<16x32xf32>
    %79 = vector.broadcast %10 : vector<1x32xf32> to vector<16x32xf32>
    %80 = arith.addf %78, %79 : vector<16x32xf32>
    %81 = vector.shape_cast %71 : vector<16x32xf32> to vector<2x8x32xf32>
    %82 = arith.addf %71, %80 : vector<16x32xf32>
    %83 = vector.shape_cast %82 : vector<16x32xf32> to vector<2x8x32xf32>
    %c0_24 = arith.constant 0 : index
    %c0_25 = arith.constant 0 : index
    %84 = vector.load %arg5[%c0_24, %c0_25] : memref<12x8xf32, #tpu.memory_space<vmem>>, vector<12x8xf32>
    %85 = vector.extract_strided_slice %84 {offsets = [0, 0], sizes = [8, 8], strides = [1, 1]} : vector<12x8xf32> to vector<8x8xf32>
    %86 = vector.extract_strided_slice %84 {offsets = [8, 0], sizes = [2, 8], strides = [1, 1]} : vector<12x8xf32> to vector<2x8xf32>
    %87 = vector.extract_strided_slice %84 {offsets = [10, 0], sizes = [2, 4], strides = [1, 1]} : vector<12x8xf32> to vector<2x4xf32>
    %88 = tpu.iota {dimensions = array<i32: 1>} : vector<2x8xi32>
    %89 = tpu.iota {dimensions = array<i32: 1>} : vector<2x8x1xi32>
    %cst_26 = arith.constant 1.000000e-01 : f32
    %90 = vector.broadcast %cst_26 : f32 to vector<1x32xf32>
    %91 = arith.mulf %13, %90 : vector<1x32xf32>
    %92 = vector.shape_cast %91 : vector<1x32xf32> to vector<1x1x32xf32>
    %cst_27 = arith.constant 0.000000e+00 : f32
    %93 = vector.broadcast %cst_27 : f32 to vector<8x32xf32>
    %94 = arith.maximumf %20, %93 : vector<8x32xf32>
    %95 = arith.truncf %94 : vector<8x32xf32> to vector<8x32xbf16>
    %96 = arith.truncf %7 : vector<32x32xf32> to vector<32x32xbf16>
    %cst_28 = arith.constant dense<0.000000e+00> : vector<8x32xf32>
    %97 = tpu.matmul %95, %96, %cst_28 {dimension_numbers = #tpu.dot_dimension_numbers<[1], [0], [0], [1], [0, 0, 1, 1], [], []>} : vector<8x32xbf16>, vector<32x32xbf16>, vector<8x32xf32> -> vector<8x32xf32>
    %98 = vector.broadcast %11 : vector<1x32xf32> to vector<8x32xf32>
    %99 = arith.addf %97, %98 : vector<8x32xf32>
    %100 = vector.extract_strided_slice %20 {offsets = [0, 0], sizes = [2, 32], strides = [1, 1]} : vector<8x32xf32> to vector<2x32xf32>
    %101 = vector.shape_cast %100 : vector<2x32xf32> to vector<2x1x32xf32>
    %102 = vector.broadcast %101 : vector<2x1x32xf32> to vector<2x8x32xf32>
    %103 = arith.mulf %83, %102 : vector<2x8x32xf32>
    %cst_29 = arith.constant dense<0.000000e+00> : vector<2x8xf32>
    %104 = vector.multi_reduction <add>, %103, %cst_29 [2] : vector<2x8x32xf32> to vector<2x8xf32>
    %105 = vector.broadcast %1 : f32 to vector<2x8xf32>
    %106 = arith.mulf %104, %105 : vector<2x8xf32>
    %cst_30 = arith.constant 0.000000e+00 : f32
    %107 = vector.broadcast %cst_30 : f32 to vector<2x8xf32>
    %108 = arith.cmpf ogt, %86, %107 : vector<2x8xf32>
    %cst_31 = arith.constant -1.000000e+30 : f32
    %109 = vector.broadcast %cst_31 : f32 to vector<2x8xf32>
    %110 = arith.select %108, %109, %106 : vector<2x8xi1>, vector<2x8xf32>
    %111 = vector.extract_strided_slice %85 {offsets = [0, 0], sizes = [2, 8], strides = [1, 1]} : vector<8x8xf32> to vector<2x8xf32>
    %112 = arith.addf %110, %111 : vector<2x8xf32>
    %113 = tpu.reduce_index %112 {axis = 1 : i32, kind = #tpu.reduction_kind<arg_max>} : vector<2x8xf32> -> vector<2xi32>
    %114 = vector.shape_cast %113 : vector<2xi32> to vector<2x1xi32>
    %115 = vector.extract_strided_slice %87 {offsets = [0, 0], sizes = [2, 1], strides = [1, 1]} : vector<2x4xf32> to vector<2x1xf32>
    %cst_32 = arith.constant 1.000000e+00 : f32
    %116 = vector.broadcast %cst_32 : f32 to vector<2x1xf32>
    %117 = arith.subf %116, %115 : vector<2x1xf32>
    %118 = vector.broadcast %114 : vector<2x1xi32> to vector<2x8xi32>
    %119 = arith.cmpi eq, %88, %118 : vector<2x8xi32>
    %120 = arith.extui %119 : vector<2x8xi1> to vector<2x8xi32>
    %121 = arith.sitofp %120 : vector<2x8xi32> to vector<2x8xf32>
    %122 = vector.broadcast %117 : vector<2x1xf32> to vector<2x8xf32>
    %123 = arith.mulf %121, %122 : vector<2x8xf32>
    %124 = vector.shape_cast %114 : vector<2x1xi32> to vector<2x1x1xi32>
    %125 = vector.broadcast %124 : vector<2x1x1xi32> to vector<2x8x1xi32>
    %126 = arith.cmpi eq, %89, %125 : vector<2x8x1xi32>
    %127 = arith.extui %126 : vector<2x8x1xi1> to vector<2x8x1xi32>
    %128 = arith.sitofp %127 : vector<2x8x1xi32> to vector<2x8x1xf32>
    %129 = vector.shape_cast %117 : vector<2x1xf32> to vector<2x1x1xf32>
    %130 = vector.broadcast %129 : vector<2x1x1xf32> to vector<2x8x1xf32>
    %131 = arith.mulf %128, %130 : vector<2x8x1xf32>
    %cst_33 = arith.constant 0.000000e+00 : f32
    %132 = vector.broadcast %cst_33 : f32 to vector<2x8x32xf32>
    %133 = arith.maximumf %81, %132 : vector<2x8x32xf32>
    %134 = vector.shape_cast %133 : vector<2x8x32xf32> to vector<16x32xf32>
    %135 = arith.truncf %134 : vector<16x32xf32> to vector<16x32xbf16>
    %cst_34 = arith.constant dense<0.000000e+00> : vector<16x32xf32>
    %136 = tpu.matmul %135, %6, %cst_34 {dimension_numbers = #tpu.dot_dimension_numbers<[1], [0], [0], [1], [0, 0, 1, 1], [], []>} : vector<16x32xbf16>, vector<32x32xbf16>, vector<16x32xf32> -> vector<16x32xf32>
    %137 = vector.shape_cast %136 : vector<16x32xf32> to vector<2x8x32xf32>
    %138 = vector.extract_strided_slice %99 {offsets = [0, 0], sizes = [2, 32], strides = [1, 1]} : vector<8x32xf32> to vector<2x32xf32>
    %139 = vector.shape_cast %138 : vector<2x32xf32> to vector<2x1x32xf32>
    %140 = vector.broadcast %139 : vector<2x1x32xf32> to vector<2x8x32xf32>
    %141 = arith.addf %137, %140 : vector<2x8x32xf32>
    %142 = vector.broadcast %131 : vector<2x8x1xf32> to vector<2x8x32xf32>
    %143 = arith.mulf %142, %141 : vector<2x8x32xf32>
    %144 = arith.addf %81, %143 : vector<2x8x32xf32>
    %145 = vector.broadcast %92 : vector<1x1x32xf32> to vector<2x8x32xf32>
    %146 = arith.addf %141, %145 : vector<2x8x32xf32>
    %147 = vector.broadcast %131 : vector<2x8x1xf32> to vector<2x8x32xf32>
    %148 = arith.mulf %147, %146 : vector<2x8x32xf32>
    %149 = arith.addf %83, %148 : vector<2x8x32xf32>
    %150 = vector.extract_strided_slice %20 {offsets = [2, 0], sizes = [2, 32], strides = [1, 1]} : vector<8x32xf32> to vector<2x32xf32>
    %151 = vector.shape_cast %150 : vector<2x32xf32> to vector<2x1x32xf32>
    %152 = vector.broadcast %151 : vector<2x1x32xf32> to vector<2x8x32xf32>
    %153 = arith.mulf %149, %152 : vector<2x8x32xf32>
    %cst_35 = arith.constant dense<0.000000e+00> : vector<2x8xf32>
    %154 = vector.multi_reduction <add>, %153, %cst_35 [2] : vector<2x8x32xf32> to vector<2x8xf32>
    %155 = vector.broadcast %1 : f32 to vector<2x8xf32>
    %156 = arith.mulf %154, %155 : vector<2x8xf32>
    %cst_36 = arith.constant 0.000000e+00 : f32
    %157 = vector.broadcast %cst_36 : f32 to vector<2x8xf32>
    %158 = arith.cmpf ogt, %86, %157 : vector<2x8xf32>
    %cst_37 = arith.constant -1.000000e+30 : f32
    %159 = vector.broadcast %cst_37 : f32 to vector<2x8xf32>
    %160 = arith.select %158, %159, %156 : vector<2x8xi1>, vector<2x8xf32>
    %161 = vector.extract_strided_slice %85 {offsets = [2, 0], sizes = [2, 8], strides = [1, 1]} : vector<8x8xf32> to vector<2x8xf32>
    %162 = arith.addf %160, %161 : vector<2x8xf32>
    %163 = tpu.reduce_index %162 {axis = 1 : i32, kind = #tpu.reduction_kind<arg_max>} : vector<2x8xf32> -> vector<2xi32>
    %164 = vector.shape_cast %163 : vector<2xi32> to vector<2x1xi32>
    %165 = vector.extract_strided_slice %87 {offsets = [0, 1], sizes = [2, 1], strides = [1, 1]} : vector<2x4xf32> to vector<2x1xf32>
    %cst_38 = arith.constant 1.000000e+00 : f32
    %166 = vector.broadcast %cst_38 : f32 to vector<2x1xf32>
    %167 = arith.subf %166, %165 : vector<2x1xf32>
    %168 = vector.broadcast %164 : vector<2x1xi32> to vector<2x8xi32>
    %169 = arith.cmpi eq, %88, %168 : vector<2x8xi32>
    %170 = arith.extui %169 : vector<2x8xi1> to vector<2x8xi32>
    %171 = arith.sitofp %170 : vector<2x8xi32> to vector<2x8xf32>
    %172 = vector.broadcast %167 : vector<2x1xf32> to vector<2x8xf32>
    %173 = arith.mulf %171, %172 : vector<2x8xf32>
    %174 = vector.shape_cast %164 : vector<2x1xi32> to vector<2x1x1xi32>
    %175 = vector.broadcast %174 : vector<2x1x1xi32> to vector<2x8x1xi32>
    %176 = arith.cmpi eq, %89, %175 : vector<2x8x1xi32>
    %177 = arith.extui %176 : vector<2x8x1xi1> to vector<2x8x1xi32>
    %178 = arith.sitofp %177 : vector<2x8x1xi32> to vector<2x8x1xf32>
    %179 = vector.shape_cast %167 : vector<2x1xf32> to vector<2x1x1xf32>
    %180 = vector.broadcast %179 : vector<2x1x1xf32> to vector<2x8x1xf32>
    %181 = arith.mulf %178, %180 : vector<2x8x1xf32>
    %cst_39 = arith.constant 0.000000e+00 : f32
    %182 = vector.broadcast %cst_39 : f32 to vector<2x8x32xf32>
    %183 = arith.maximumf %144, %182 : vector<2x8x32xf32>
    %184 = vector.shape_cast %183 : vector<2x8x32xf32> to vector<16x32xf32>
    %185 = arith.truncf %184 : vector<16x32xf32> to vector<16x32xbf16>
    %cst_40 = arith.constant dense<0.000000e+00> : vector<16x32xf32>
    %186 = tpu.matmul %185, %6, %cst_40 {dimension_numbers = #tpu.dot_dimension_numbers<[1], [0], [0], [1], [0, 0, 1, 1], [], []>} : vector<16x32xbf16>, vector<32x32xbf16>, vector<16x32xf32> -> vector<16x32xf32>
    %187 = vector.shape_cast %186 : vector<16x32xf32> to vector<2x8x32xf32>
    %188 = vector.extract_strided_slice %99 {offsets = [2, 0], sizes = [2, 32], strides = [1, 1]} : vector<8x32xf32> to vector<2x32xf32>
    %189 = vector.shape_cast %188 : vector<2x32xf32> to vector<2x1x32xf32>
    %190 = vector.broadcast %189 : vector<2x1x32xf32> to vector<2x8x32xf32>
    %191 = arith.addf %187, %190 : vector<2x8x32xf32>
    %192 = vector.broadcast %181 : vector<2x8x1xf32> to vector<2x8x32xf32>
    %193 = arith.mulf %192, %191 : vector<2x8x32xf32>
    %194 = arith.addf %144, %193 : vector<2x8x32xf32>
    %195 = vector.broadcast %92 : vector<1x1x32xf32> to vector<2x8x32xf32>
    %196 = arith.addf %191, %195 : vector<2x8x32xf32>
    %197 = vector.broadcast %181 : vector<2x8x1xf32> to vector<2x8x32xf32>
    %198 = arith.mulf %197, %196 : vector<2x8x32xf32>
    %199 = arith.addf %149, %198 : vector<2x8x32xf32>
    %200 = vector.extract_strided_slice %20 {offsets = [4, 0], sizes = [2, 32], strides = [1, 1]} : vector<8x32xf32> to vector<2x32xf32>
    %201 = vector.shape_cast %200 : vector<2x32xf32> to vector<2x1x32xf32>
    %202 = vector.broadcast %201 : vector<2x1x32xf32> to vector<2x8x32xf32>
    %203 = arith.mulf %199, %202 : vector<2x8x32xf32>
    %cst_41 = arith.constant dense<0.000000e+00> : vector<2x8xf32>
    %204 = vector.multi_reduction <add>, %203, %cst_41 [2] : vector<2x8x32xf32> to vector<2x8xf32>
    %205 = vector.broadcast %1 : f32 to vector<2x8xf32>
    %206 = arith.mulf %204, %205 : vector<2x8xf32>
    %cst_42 = arith.constant 0.000000e+00 : f32
    %207 = vector.broadcast %cst_42 : f32 to vector<2x8xf32>
    %208 = arith.cmpf ogt, %86, %207 : vector<2x8xf32>
    %cst_43 = arith.constant -1.000000e+30 : f32
    %209 = vector.broadcast %cst_43 : f32 to vector<2x8xf32>
    %210 = arith.select %208, %209, %206 : vector<2x8xi1>, vector<2x8xf32>
    %211 = vector.extract_strided_slice %85 {offsets = [4, 0], sizes = [2, 8], strides = [1, 1]} : vector<8x8xf32> to vector<2x8xf32>
    %212 = arith.addf %210, %211 : vector<2x8xf32>
    %213 = tpu.reduce_index %212 {axis = 1 : i32, kind = #tpu.reduction_kind<arg_max>} : vector<2x8xf32> -> vector<2xi32>
    %214 = vector.shape_cast %213 : vector<2xi32> to vector<2x1xi32>
    %215 = vector.extract_strided_slice %87 {offsets = [0, 2], sizes = [2, 1], strides = [1, 1]} : vector<2x4xf32> to vector<2x1xf32>
    %cst_44 = arith.constant 1.000000e+00 : f32
    %216 = vector.broadcast %cst_44 : f32 to vector<2x1xf32>
    %217 = arith.subf %216, %215 : vector<2x1xf32>
    %218 = vector.broadcast %214 : vector<2x1xi32> to vector<2x8xi32>
    %219 = arith.cmpi eq, %88, %218 : vector<2x8xi32>
    %220 = arith.extui %219 : vector<2x8xi1> to vector<2x8xi32>
    %221 = arith.sitofp %220 : vector<2x8xi32> to vector<2x8xf32>
    %222 = vector.broadcast %217 : vector<2x1xf32> to vector<2x8xf32>
    %223 = arith.mulf %221, %222 : vector<2x8xf32>
    %224 = vector.shape_cast %214 : vector<2x1xi32> to vector<2x1x1xi32>
    %225 = vector.broadcast %224 : vector<2x1x1xi32> to vector<2x8x1xi32>
    %226 = arith.cmpi eq, %89, %225 : vector<2x8x1xi32>
    %227 = arith.extui %226 : vector<2x8x1xi1> to vector<2x8x1xi32>
    %228 = arith.sitofp %227 : vector<2x8x1xi32> to vector<2x8x1xf32>
    %229 = vector.shape_cast %217 : vector<2x1xf32> to vector<2x1x1xf32>
    %230 = vector.broadcast %229 : vector<2x1x1xf32> to vector<2x8x1xf32>
    %231 = arith.mulf %228, %230 : vector<2x8x1xf32>
    %cst_45 = arith.constant 0.000000e+00 : f32
    %232 = vector.broadcast %cst_45 : f32 to vector<2x8x32xf32>
    %233 = arith.maximumf %194, %232 : vector<2x8x32xf32>
    %234 = vector.shape_cast %233 : vector<2x8x32xf32> to vector<16x32xf32>
    %235 = arith.truncf %234 : vector<16x32xf32> to vector<16x32xbf16>
    %cst_46 = arith.constant dense<0.000000e+00> : vector<16x32xf32>
    %236 = tpu.matmul %235, %6, %cst_46 {dimension_numbers = #tpu.dot_dimension_numbers<[1], [0], [0], [1], [0, 0, 1, 1], [], []>} : vector<16x32xbf16>, vector<32x32xbf16>, vector<16x32xf32> -> vector<16x32xf32>
    %237 = vector.shape_cast %236 : vector<16x32xf32> to vector<2x8x32xf32>
    %238 = vector.extract_strided_slice %99 {offsets = [4, 0], sizes = [2, 32], strides = [1, 1]} : vector<8x32xf32> to vector<2x32xf32>
    %239 = vector.shape_cast %238 : vector<2x32xf32> to vector<2x1x32xf32>
    %240 = vector.broadcast %239 : vector<2x1x32xf32> to vector<2x8x32xf32>
    %241 = arith.addf %237, %240 : vector<2x8x32xf32>
    %242 = vector.broadcast %92 : vector<1x1x32xf32> to vector<2x8x32xf32>
    %243 = arith.addf %241, %242 : vector<2x8x32xf32>
    %244 = vector.broadcast %231 : vector<2x8x1xf32> to vector<2x8x32xf32>
    %245 = arith.mulf %244, %243 : vector<2x8x32xf32>
    %246 = arith.addf %199, %245 : vector<2x8x32xf32>
    %247 = vector.extract_strided_slice %20 {offsets = [6, 0], sizes = [2, 32], strides = [1, 1]} : vector<8x32xf32> to vector<2x32xf32>
    %248 = vector.shape_cast %247 : vector<2x32xf32> to vector<2x1x32xf32>
    %249 = vector.broadcast %248 : vector<2x1x32xf32> to vector<2x8x32xf32>
    %250 = arith.mulf %246, %249 : vector<2x8x32xf32>
    %cst_47 = arith.constant dense<0.000000e+00> : vector<2x8xf32>
    %251 = vector.multi_reduction <add>, %250, %cst_47 [2] : vector<2x8x32xf32> to vector<2x8xf32>
    %252 = vector.broadcast %1 : f32 to vector<2x8xf32>
    %253 = arith.mulf %251, %252 : vector<2x8xf32>
    %cst_48 = arith.constant 0.000000e+00 : f32
    %254 = vector.broadcast %cst_48 : f32 to vector<2x8xf32>
    %255 = arith.cmpf ogt, %86, %254 : vector<2x8xf32>
    %cst_49 = arith.constant -1.000000e+30 : f32
    %256 = vector.broadcast %cst_49 : f32 to vector<2x8xf32>
    %257 = arith.select %255, %256, %253 : vector<2x8xi1>, vector<2x8xf32>
    %258 = vector.extract_strided_slice %85 {offsets = [6, 0], sizes = [2, 8], strides = [1, 1]} : vector<8x8xf32> to vector<2x8xf32>
    %259 = arith.addf %257, %258 : vector<2x8xf32>
    %260 = tpu.reduce_index %259 {axis = 1 : i32, kind = #tpu.reduction_kind<arg_max>} : vector<2x8xf32> -> vector<2xi32>
    %261 = vector.shape_cast %260 : vector<2xi32> to vector<2x1xi32>
    %262 = vector.extract_strided_slice %87 {offsets = [0, 3], sizes = [2, 1], strides = [1, 1]} : vector<2x4xf32> to vector<2x1xf32>
    %cst_50 = arith.constant 1.000000e+00 : f32
    %263 = vector.broadcast %cst_50 : f32 to vector<2x1xf32>
    %264 = arith.subf %263, %262 : vector<2x1xf32>
    %265 = vector.broadcast %261 : vector<2x1xi32> to vector<2x8xi32>
    %266 = arith.cmpi eq, %88, %265 : vector<2x8xi32>
    %267 = arith.extui %266 : vector<2x8xi1> to vector<2x8xi32>
    %268 = arith.sitofp %267 : vector<2x8xi32> to vector<2x8xf32>
    %269 = vector.broadcast %264 : vector<2x1xf32> to vector<2x8xf32>
    %270 = arith.mulf %268, %269 : vector<2x8xf32>
    %271 = vector.shape_cast %123 : vector<2x8xf32> to vector<1x2x8xf32>
    %272 = vector.shape_cast %173 : vector<2x8xf32> to vector<1x2x8xf32>
    %273 = vector.shape_cast %223 : vector<2x8xf32> to vector<1x2x8xf32>
    %274 = vector.shape_cast %270 : vector<2x8xf32> to vector<1x2x8xf32>
    %275 = tpu.concatenate %271, %272, %273, %274 in 0 : vector<1x2x8xf32>, vector<1x2x8xf32>, vector<1x2x8xf32>, vector<1x2x8xf32> -> vector<4x2x8xf32>
    %c0_51 = arith.constant 0 : index
    %c0_52 = arith.constant 0 : index
    %c0_53 = arith.constant 0 : index
    %276 = vector.load %arg6[%c0_51, %c0_52, %c0_53] : memref<4x2x8xf32, #tpu.memory_space<vmem>>, vector<4x2x8xf32>
    tpu.vector_store %arg6[%c0_51, %c0_52, %c0_53], %275 {strides = array<i32>} : memref<4x2x8xf32, #tpu.memory_space<vmem>>, vector<4x2x8xf32>,
    return
  }
}

</mosaic_0001>

<llo_original>
// kernel: mul.38
$region0: #{mul.38}
  %s0 = inlined_call_operand.vmem [shape: f32[2,8], index: 0, kind: input, shape index: {}]
  %s1 = inlined_call_operand.vmem [shape: f32[16], index: 1, kind: output, shape index: {}]
  $region1: #{mul.38} parent=0
    #allocation0 [shape = 'u8[4096]{0}', space=vmem, size = 0x1000, scoped, tag = 'scoped mem for output reshape']
    #allocation1 [shape = 'u8[4096]{0}', space=vmem, size = 0x1000, scoped, tag = 'scoped mem for input reshape']
    %s3 = sshllo.u32 0, 2
    %v4 = vld [vmem:[%s0] sm:%s3]
    %5 = vst [vmem:[#allocation1] sm:%s3] %v4
    %v6 = vld [vmem:[#allocation1] sm:$0x1]
    %vm7 = vcmask 64512
    %8 = vst.msk [vmem:[#allocation0] sm:$0x1] %vm7, %v6
    %s9 = scalar_lea.vmem [#allocation1], 1
    %v10 = vld [vmem:[%s9] sm:$0x1]
    %11 = vrot.lane.b32.xlu0 %v10, 8
    %v12 = vpop.permute.xlu0 %11
    %vm13 = vcmask 130112
    %14 = vst.msk [vmem:[#allocation0] sm:$0x1] %vm13, %v12
    %s16 = sshllo.u32 0, 1
    %v18 = vld [vmem:[#allocation0] sm:%s16]
    %s19 = sshllo.u32 0, 1
    %20 = vst [vmem:[%s1] sm:%s19] %v18

// kernel: alloc_policy_forward.1
$region0: #{alloc_policy_forward.1}
  #allocation0 [shape = 'u32[]', space=smem, size = 0x4, offset = 0x4, fixed_abs, tag = 'smem constant byte address 0x4 - core index']
  #allocation1 [shape = 'u32[144,128]{1,0:T(1,128)}', space=vmem, size = 0x12000, scoped, tag = 'internal scratch']
  %s0 = inlined_call_operand.vmem [shape: f32[24,24], index: 0, kind: input, shape index: {}]
  %s1 = inlined_call_operand.vmem [shape: f32[126,32], index: 1, kind: input, shape index: {}]
  %s2 = inlined_call_operand.vmem [shape: f32[32,96], index: 2, kind: input, shape index: {}]
  %s3 = inlined_call_operand.vmem [shape: f32[16,16], index: 3, kind: input, shape index: {}]
  %s4 = inlined_call_operand.vmem [shape: f32[16,17], index: 4, kind: input, shape index: {}]
  %s5 = inlined_call_operand.vmem [shape: f32[12,8], index: 5, kind: input, shape index: {}]
  %s6 = inlined_call_operand.vmem [shape: f32[4,2,8], index: 6, kind: output, shape index: {}]
  %s7 = sld [smem:[#allocation0]]
  $region34: #{alloc_policy_forward.1} parent=0
    _
  %s9 = ssub.s32 1, %s7
  %s10 = scalar_select 0, %s9, %s7
  // Predicated region
  $region2: #{alloc_policy_forward.1} parent=0 // pred_check
    _
  $region3: #{alloc_policy_forward.1} parent=0 // pred_check_branch
    %12 = sbr.rel (0) target = $region5
  $region4: #{alloc_policy_forward.1} parent=0 // pred_region
    _
  $region5: #{alloc_policy_forward.1} parent=0 // pred_fallthru
    _
  // Predicated region
  $region6: #{alloc_policy_forward.1} parent=0 // pred_check
    _
  $region7: #{alloc_policy_forward.1} parent=0 // pred_check_branch
    %14 = sbr.rel (0) target = $region9
  $region8: #{alloc_policy_forward.1} parent=0 // pred_region
    _
  $region9: #{alloc_policy_forward.1} parent=0 // pred_fallthru
    _
  // Predicated region
  $region10: #{alloc_policy_forward.1} parent=0 // pred_check
    _
  $region11: #{alloc_policy_forward.1} parent=0 // pred_check_branch
    %16 = sbr.rel (0) target = $region13
  $region12: #{alloc_policy_forward.1} parent=0 // pred_region
    _
  $region13: #{alloc_policy_forward.1} parent=0 // pred_fallthru
    _
  // Predicated region
  $region14: #{alloc_policy_forward.1} parent=0 // pred_check
    _
  $region15: #{alloc_policy_forward.1} parent=0 // pred_check_branch
    %18 = sbr.rel (0) target = $region17
  $region16: #{alloc_policy_forward.1} parent=0 // pred_region
    _
  $region17: #{alloc_policy_forward.1} parent=0 // pred_fallthru
    _
  // Predicated region
  $region18: #{alloc_policy_forward.1} parent=0 // pred_check
    _
  $region19: #{alloc_policy_forward.1} parent=0 // pred_check_branch
    %20 = sbr.rel (0) target = $region21
  $region20: #{alloc_policy_forward.1} parent=0 // pred_region
    _
  $region21: #{alloc_policy_forward.1} parent=0 // pred_fallthru
    _
  // Predicated region
  $region22: #{alloc_policy_forward.1} parent=0 // pred_check
    _
  $region23: #{alloc_policy_forward.1} parent=0 // pred_check_branch
    %22 = sbr.rel (0) target = $region25
  $region24: #{alloc_policy_forward.1} parent=0 // pred_region
    _
  $region25: #{alloc_policy_forward.1} parent=0 // pred_fallthru
    _
  %v24 = vld [vmem:[%s1] sm:$0xff]
  %v25 = vld [vmem:[%s1 + $0x8] sm:$0xff]
  %v26 = vld [vmem:[%s1 + $0x10] sm:$0xff]
  %v27 = vld [vmem:[%s1 + $0x18] sm:$0xff]
  %v28 = vld [vmem:[%s1 + $0x20] sm:$0xff]
  %v29 = vld [vmem:[%s1 + $0x28] sm:$0xff]
  %v30 = vld [vmem:[%s1 + $0x30] sm:$0xff]
  %v31 = vld [vmem:[%s1 + $0x38] sm:$0xff]
  %v32 = vld [vmem:[%s1 + $0x40] sm:$0xff]
  %v33 = vld [vmem:[%s1 + $0x48] sm:$0xff]
  %v34 = vld [vmem:[%s1 + $0x50] sm:$0xff]
  %v35 = vld [vmem:[%s1 + $0x58] sm:$0xff]
  %v36 = vld [vmem:[%s1 + $0x60] sm:$0xff]
  %v37 = vld [vmem:[%s1 + $0x68] sm:$0xff]
  %v38 = vld [vmem:[%s1 + $0x70] sm:$0xff]
  %v39 = vld [vmem:[%s1 + $0x78] sm:$0x3f]
  %v40 = vpack.c.bf16 %v32, %v31
  %v41 = vpack.c.bf16 %v34, %v33
  %v42 = vld [vmem:[%s0] sm:$0xff]
  %v43 = vld [vmem:[%s0 + $0x8] sm:$0xff]
  %v44 = vld [vmem:[%s0 + $0x10] sm:$0xff]
  %v45 = vpack.c.bf16 %v43, %v42
  %v46 = vpack.c.bf16 %v44, %v44
  %v47 = vpack.c.bf16 %v25, %v24
  %v48 = vpack.c.bf16 %v26, %v26
  %v49 = vlaneseq
  %v50 = vshrl.u32 %v49, 7
  %v51 = vsub.s32 0, %v50
  %v52 = vrot.slane %v39, %v51
  %vm53 = vcmask 195584
  %v55 = vsel %vm53, %v45, 0
  %v58 = vsel %vm53, %v46, 0
  %vm60 = vcmask 1043456
  %v62 = vsel %vm60, %v48, 0
  %64 = vmatprep.subr.bf16.mxu0 0
  %65 = vmatpush1.bf16.msra.mxu0 %v47
  %66 = vmatprep.subr.bf16.mxu0 0
  %67 = vmatpush1.bf16.msra.mxu0 %v62
  %68 = vmatprep.subr.bf16.mxu0 0
  %69 = vmatpush1.bf16.msra.mxu0 0
  %70 = vmatprep.subr.bf16.mxu0 0
  %71 = vmatpush1.bf16.msra.mxu0 0
  %72 = vmatprep.subr.bf16.mxu0 0
  %73 = vmatpush1.bf16.msra.mxu0 0
  %74 = vmatprep.subr.bf16.mxu0 0
  %75 = vmatpush1.bf16.msra.mxu0 0
  %76 = vmatprep.subr.bf16.mxu0 0
  %77 = vmatpush1.bf16.msra.mxu0 0
  %78 = vmatprep.subr.bf16.mxu0 0
  %79 = vmatpush1.bf16.msra.mxu0 0
  %80 = vmatprep.subr.bf16.mxu0 0
  %81 = vmatpush1.bf16.msra.mxu0 0
  %82 = vmatprep.subr.bf16.mxu0 0
  %83 = vmatpush1.bf16.msra.mxu0 0
  %84 = vmatprep.subr.bf16.mxu0 0
  %85 = vmatpush1.bf16.msra.mxu0 0
  %86 = vmatprep.subr.bf16.mxu0 0
  %87 = vmatpush1.bf16.msra.mxu0 0
  %88 = vmatprep.subr.bf16.mxu0 0
  %89 = vmatpush1.bf16.msra.mxu0 0
  %90 = vmatprep.subr.bf16.mxu0 0
  %91 = vmatpush1.bf16.msra.mxu0 0
  %92 = vmatprep.subr.bf16.mxu0 0
  %93 = vmatpush1.bf16.msra.mxu0 0
  %94 = vmatprep.subr.bf16.mxu0 0
  %95 = vmatpush1.bf16.msra.mxu0 0
  %96 = vmatprep.mubr.bf16.mxu0 0
  %97 = vmatmul.mubr.bf16.gmra.mrb[0].mxu0 %v55
  %v98 = vpop.f32.mrb[0].mxu0
  %v99 = vadd.f32 %v52, %v98
  %v100 = vpop.f32.mrb[0].mxu0
  %v101 = vpop.f32.mrb[0].mxu0
  %v102 = vadd.f32 %v52, %v101
  %v103 = vpop.f32.mrb[0].mxu0
  %104 = vmatprep.mubr.bf16.mxu0 0
  %105 = vmatmul.mubr.bf16.gmra.mrb[0].mxu0 %v58
  %v106 = vpop.f32.mrb[0].mxu0
  %v107 = vadd.f32 %v52, %v106
  %v108 = vpop.f32.mrb[0].mxu0
  %v109 = vpop.f32.mrb[0].mxu0
  %v110 = vpop.f32.mrb[0].mxu0
  %111 = vdwg.mxu0
  %v112 = vmax.f32 %v102, 0.0
  %v113 = vmax.f32 %v107, 0.0
  %v114 = vpack.c.bf16 %v113, %v112
  %v115 = vld [vmem:[%s2] sm:$0xff]
  %v116 = vld [vmem:[%s2 + $0x8] sm:$0xff]
  %v117 = vld [vmem:[%s2 + $0x10] sm:$0xff]
  %v118 = vld [vmem:[%s2 + $0x18] sm:$0xff]
  %v119 = vpack.c.bf16 %v116, %v115
  %v120 = vpack.c.bf16 %v118, %v117
  %vm121 = vcmask 261120
  %v123 = vsel %vm121, %v114, 0
  %125 = vmatprep.subr.bf16.mxu0 0
  %126 = vmatpush1.bf16.msra.mxu0 %v119
  %127 = vmatprep.subr.bf16.mxu0 0
  %128 = vmatpush1.bf16.msra.mxu0 %v120
  %129 = vmatprep.subr.bf16.mxu0 0
  %130 = vmatpush1.bf16.msra.mxu0 0
  %131 = vmatprep.subr.bf16.mxu0 0
  %132 = vmatpush1.bf16.msra.mxu0 0
  %133 = vmatprep.subr.bf16.mxu0 0
  %134 = vmatpush1.bf16.msra.mxu0 0
  %135 = vmatprep.subr.bf16.mxu0 0
  %136 = vmatpush1.bf16.msra.mxu0 0
  %137 = vmatprep.subr.bf16.mxu0 0
  %138 = vmatpush1.bf16.msra.mxu0 0
  %139 = vmatprep.subr.bf16.mxu0 0
  %140 = vmatpush1.bf16.msra.mxu0 0
  %141 = vmatprep.subr.bf16.mxu0 0
  %142 = vmatpush1.bf16.msra.mxu0 0
  %143 = vmatprep.subr.bf16.mxu0 0
  %144 = vmatpush1.bf16.msra.mxu0 0
  %145 = vmatprep.subr.bf16.mxu0 0
  %146 = vmatpush1.bf16.msra.mxu0 0
  %147 = vmatprep.subr.bf16.mxu0 0
  %148 = vmatpush1.bf16.msra.mxu0 0
  %149 = vmatprep.subr.bf16.mxu0 0
  %150 = vmatpush1.bf16.msra.mxu0 0
  %151 = vmatprep.subr.bf16.mxu0 0
  %152 = vmatpush1.bf16.msra.mxu0 0
  %153 = vmatprep.subr.bf16.mxu0 0
  %154 = vmatpush1.bf16.msra.mxu0 0
  %155 = vmatprep.subr.bf16.mxu0 0
  %156 = vmatpush1.bf16.msra.mxu0 0
  %157 = vmatprep.mubr.bf16.mxu0 0
  %158 = vmatmul.mubr.bf16.gmra.mrb[0].mxu0 %v123
  %v159 = vpop.f32.mrb[0].mxu0
  %v160 = vadd.f32 0.0, %v159
  %v161 = vpop.f32.mrb[0].mxu0
  %v162 = vpop.f32.mrb[0].mxu0
  %v163 = vadd.f32 0.0, %v162
  %v164 = vpop.f32.mrb[0].mxu0
  %165 = vdwg.mxu0
  %v166 = vpack.c.bf16 %v163, %v160
  %v167 = vld [vmem:[%s4] sm:$0xff]
  %v168 = vld [vmem:[%s4 + $0x8] sm:$0xff]
  %170 = vrot.lane.b32.xlu0 %v166, 96
  %v171 = vpop.permute.xlu0 %170
  %v173 = vsel %vm121, %v166, 0
  %v176 = vsel %vm121, %v171, 0
  %178 = vmatprep.subr.bf16.mxu0 0
  %179 = vmatpush1.bf16.xpose.msra.mxu0 %v176
  %180 = vmatprep.subr.bf16.mxu0 0
  %181 = vmatpush1.bf16.xpose.msra.mxu0 0
  %182 = vmatprep.subr.bf16.mxu0 0
  %183 = vmatpush1.bf16.xpose.msra.mxu0 0
  %184 = vmatprep.subr.bf16.mxu0 0
  %185 = vmatpush1.bf16.xpose.msra.mxu0 0
  %186 = vmatprep.subr.bf16.mxu0 0
  %187 = vmatpush1.bf16.xpose.msra.mxu0 0
  %188 = vmatprep.subr.bf16.mxu0 0
  %189 = vmatpush1.bf16.xpose.msra.mxu0 0
  %190 = vmatprep.subr.bf16.mxu0 0
  %191 = vmatpush1.bf16.xpose.msra.mxu0 0
  %192 = vmatprep.subr.bf16.mxu0 0
  %193 = vmatpush1.bf16.xpose.msra.mxu0 0
  %194 = vmatprep.subr.bf16.mxu0 0
  %195 = vmatpush1.bf16.xpose.msra.mxu0 0
  %196 = vmatprep.subr.bf16.mxu0 0
  %197 = vmatpush1.bf16.xpose.msra.mxu0 0
  %198 = vmatprep.subr.bf16.mxu0 0
  %199 = vmatpush1.bf16.xpose.msra.mxu0 0
  %200 = vmatprep.subr.bf16.mxu0 0
  %201 = vmatpush1.bf16.xpose.msra.mxu0 0
  %202 = vmatprep.subr.bf16.mxu0 0
  %203 = vmatpush1.bf16.xpose.msra.mxu0 0
  %204 = vmatprep.subr.bf16.mxu0 0
  %205 = vmatpush1.bf16.xpose.msra.mxu0 0
  %206 = vmatprep.subr.bf16.mxu0 0
  %207 = vmatpush1.bf16.xpose.msra.mxu0 0
  %208 = vmatprep.subr.bf16.mxu0 0
  %209 = vmatpush1.bf16.xpose.msra.mxu0 0
  %210 = vmatprep.mubr.bf16.mxu0 0
  %211 = vmatmul.mubr.bf16.gmra.mrb[0].mxu0 %v173
  %v212 = vpop.f32.mrb[0].mxu0
  %v213 = vadd.f32 0.0, %v212
  %v214 = vpop.f32.mrb[0].mxu0
  %v215 = vpop.f32.mrb[0].mxu0
  %v216 = vadd.f32 0.0, %v215
  %v217 = vpop.f32.mrb[0].mxu0
  %218 = vdwg.mxu0
  %v219 = vmul.f32 %v213, 0.17677669
  %v220 = vmul.f32 %v216, 0.17677669
  %vm221 = vcmp.gt.f32.partialorder %v167, 0.0
  %vm222 = vcmp.gt.f32.partialorder %v168, 0.0
  %v223 = vsel %vm221, %v219, -1e+30
  %v224 = vsel %vm222, %v220, -1e+30
  %vm225 = vcmask 130048
  %v226 = vsel %vm225, %v223, -inf
  %227 = vmax.xlane.f32.xlu0 %v226
  %v228 = vpop.xlane.xlu0 %227
  %v229 = vsel %vm225, %v224, -inf
  %230 = vmax.xlane.f32.xlu0 %v229
  %v231 = vpop.xlane.xlu0 %230
  %v232 = vsub.f32 %v223, %v228
  %v233 = vsub.f32 %v224, %v231
  %v234 = vmul.f32 %v232, 1.442695
  %v235 = vpow.pop %v234
  %v236 = vmul.f32 %v233, 1.442695
  %v237 = vpow.pop %v236
  %v238 = vmul.f32 %v235, %v167
  %v239 = vmul.f32 %v237, %v168
  %v240 = vsel %vm225, %v238, 0.0
  %241 = vadd.xlane.f32.xlu0 %v240
  %v242 = vpop.xlane.xlu0 %241
  %v243 = vsel %vm225, %v239, 0.0
  %244 = vadd.xlane.f32.xlu0 %v243
  %v245 = vpop.xlane.xlu0 %244
  %vm246 = vcmp.eq.f32.partialorder %v242, 0.0
  %vm247 = vcmp.eq.f32.partialorder %v245, 0.0
  %v248 = vsel %vm246, 1, 0
  %v249 = vsel %vm247, 1, 0
  %v250 = vcvt.s32.f32 %v248
  %v251 = vcvt.s32.f32 %v249
  %v252 = vadd.f32 %v242, %v250
  %v253 = vadd.f32 %v245, %v251
  %v254 = vrcp.pop %v252
  %v255 = vmul.f32 %v238, %v254
  %v256 = vrcp.pop %v253
  %v257 = vmul.f32 %v239, %v256
  %v258 = vpack.c.bf16 %v257, %v255
  %259 = vrot.lane.b32.xlu0 %v166, 64
  %v260 = vpop.permute.xlu0 %259
  %v263 = vsel %vm225, %v258, 0
  %265 = vmatprep.subr.bf16.mxu0 0
  %266 = vmatpush1.bf16.msra.mxu0 %v260
  %267 = vmatprep.subr.bf16.mxu0 0
  %268 = vmatpush1.bf16.msra.mxu0 0
  %269 = vmatprep.subr.bf16.mxu0 0
  %270 = vmatpush1.bf16.msra.mxu0 0
  %271 = vmatprep.subr.bf16.mxu0 0
  %272 = vmatpush1.bf16.msra.mxu0 0
  %273 = vmatprep.subr.bf16.mxu0 0
  %274 = vmatpush1.bf16.msra.mxu0 0
  %275 = vmatprep.subr.bf16.mxu0 0
  %276 = vmatpush1.bf16.msra.mxu0 0
  %277 = vmatprep.subr.bf16.mxu0 0
  %278 = vmatpush1.bf16.msra.mxu0 0
  %279 = vmatprep.subr.bf16.mxu0 0
  %280 = vmatpush1.bf16.msra.mxu0 0
  %281 = vmatprep.subr.bf16.mxu0 0
  %282 = vmatpush1.bf16.msra.mxu0 0
  %283 = vmatprep.subr.bf16.mxu0 0
  %284 = vmatpush1.bf16.msra.mxu0 0
  %285 = vmatprep.subr.bf16.mxu0 0
  %286 = vmatpush1.bf16.msra.mxu0 0
  %287 = vmatprep.subr.bf16.mxu0 0
  %288 = vmatpush1.bf16.msra.mxu0 0
  %289 = vmatprep.subr.bf16.mxu0 0
  %290 = vmatpush1.bf16.msra.mxu0 0
  %291 = vmatprep.subr.bf16.mxu0 0
  %292 = vmatpush1.bf16.msra.mxu0 0
  %293 = vmatprep.subr.bf16.mxu0 0
  %294 = vmatpush1.bf16.msra.mxu0 0
  %295 = vmatprep.subr.bf16.mxu0 0
  %296 = vmatpush1.bf16.msra.mxu0 0
  %297 = vmatprep.mubr.bf16.mxu0 0
  %298 = vmatmul.mubr.bf16.gmra.mrb[0].mxu0 %v263
  %v299 = vpop.f32.mrb[0].mxu0
  %v300 = vadd.f32 0.0, %v299
  %v301 = vpop.f32.mrb[0].mxu0
  %v302 = vpop.f32.mrb[0].mxu0
  %v303 = vadd.f32 0.0, %v302
  %v304 = vpop.f32.mrb[0].mxu0
  %305 = vdwg.mxu0
  %v306 = vpack.c.bf16 %v303, %v300
  %v307 = vpack.c.bf16 %v28, %v27
  %v308 = vpack.c.bf16 %v30, %v29
  %v309 = vlaneseq
  %v310 = vshrl.u32 %v309, 7
  %v311 = vsub.s32 1, %v310
  %v312 = vrot.slane %v39, %v311
  %v314 = vsel %vm121, %v306, 0
  %316 = vmatprep.subr.bf16.mxu0 0
  %317 = vmatpush1.bf16.msra.mxu0 %v307
  %318 = vmatprep.subr.bf16.mxu0 0
  %319 = vmatpush1.bf16.msra.mxu0 %v308
  %320 = vmatprep.subr.bf16.mxu0 0
  %321 = vmatpush1.bf16.msra.mxu0 0
  %322 = vmatprep.subr.bf16.mxu0 0
  %323 = vmatpush1.bf16.msra.mxu0 0
  %324 = vmatprep.subr.bf16.mxu0 0
  %325 = vmatpush1.bf16.msra.mxu0 0
  %326 = vmatprep.subr.bf16.mxu0 0
  %327 = vmatpush1.bf16.msra.mxu0 0
  %328 = vmatprep.subr.bf16.mxu0 0
  %329 = vmatpush1.bf16.msra.mxu0 0
  %330 = vmatprep.subr.bf16.mxu0 0
  %331 = vmatpush1.bf16.msra.mxu0 0
  %332 = vmatprep.subr.bf16.mxu0 0
  %333 = vmatpush1.bf16.msra.mxu0 0
  %334 = vmatprep.subr.bf16.mxu0 0
  %335 = vmatpush1.bf16.msra.mxu0 0
  %336 = vmatprep.subr.bf16.mxu0 0
  %337 = vmatpush1.bf16.msra.mxu0 0
  %338 = vmatprep.subr.bf16.mxu0 0
  %339 = vmatpush1.bf16.msra.mxu0 0
  %340 = vmatprep.subr.bf16.mxu0 0
  %341 = vmatpush1.bf16.msra.mxu0 0
  %342 = vmatprep.subr.bf16.mxu0 0
  %343 = vmatpush1.bf16.msra.mxu0 0
  %344 = vmatprep.subr.bf16.mxu0 0
  %345 = vmatpush1.bf16.msra.mxu0 0
  %346 = vmatprep.subr.bf16.mxu0 0
  %347 = vmatpush1.bf16.msra.mxu0 0
  %348 = vmatprep.mubr.bf16.mxu0 0
  %349 = vmatmul.mubr.bf16.gmra.mrb[0].mxu0 %v314
  %v350 = vpop.f32.mrb[0].mxu0
  %v351 = vadd.f32 %v312, %v350
  %v352 = vpop.f32.mrb[0].mxu0
  %v353 = vpop.f32.mrb[0].mxu0
  %v354 = vadd.f32 %v312, %v353
  %v355 = vpop.f32.mrb[0].mxu0
  %356 = vdwg.mxu0
  %358 = vset.pattern.permute.xlu0 16
  %359 = vperm.xlu0 %358, %v167
  %v360 = vpop.permute.xlu0 %359
  %363 = vset.pattern.permute.xlu0 16
  %364 = vperm.xlu0 %363, %v168
  %v365 = vpop.permute.xlu0 %364
  %v367 = vmul.f32 %v351, %v360
  %v368 = vmul.f32 %v354, %v365
  %v369 = vld [vmem:[%s3] sm:$0xff]
  %v370 = vld [vmem:[%s3 + $0x8] sm:$0xff]
  %v371 = vpack.c.bf16 %v370, %v369
  %v372 = vpack.c.bf16 %v368, %v367
  %v374 = vsel %vm225, %v371, 0
  %376 = vmatprep.subr.bf16.mxu0 0
  %377 = vmatpush1.bf16.msra.mxu0 %v372
  %378 = vmatprep.subr.bf16.mxu0 0
  %379 = vmatpush1.bf16.msra.mxu0 0
  %380 = vmatprep.subr.bf16.mxu0 0
  %381 = vmatpush1.bf16.msra.mxu0 0
  %382 = vmatprep.subr.bf16.mxu0 0
  %383 = vmatpush1.bf16.msra.mxu0 0
  %384 = vmatprep.subr.bf16.mxu0 0
  %385 = vmatpush1.bf16.msra.mxu0 0
  %386 = vmatprep.subr.bf16.mxu0 0
  %387 = vmatpush1.bf16.msra.mxu0 0
  %388 = vmatprep.subr.bf16.mxu0 0
  %389 = vmatpush1.bf16.msra.mxu0 0
  %390 = vmatprep.subr.bf16.mxu0 0
  %391 = vmatpush1.bf16.msra.mxu0 0
  %392 = vmatprep.subr.bf16.mxu0 0
  %393 = vmatpush1.bf16.msra.mxu0 0
  %394 = vmatprep.subr.bf16.mxu0 0
  %395 = vmatpush1.bf16.msra.mxu0 0
  %396 = vmatprep.subr.bf16.mxu0 0
  %397 = vmatpush1.bf16.msra.mxu0 0
  %398 = vmatprep.subr.bf16.mxu0 0
  %399 = vmatpush1.bf16.msra.mxu0 0
  %400 = vmatprep.subr.bf16.mxu0 0
  %401 = vmatpush1.bf16.msra.mxu0 0
  %402 = vmatprep.subr.bf16.mxu0 0
  %403 = vmatpush1.bf16.msra.mxu0 0
  %404 = vmatprep.subr.bf16.mxu0 0
  %405 = vmatpush1.bf16.msra.mxu0 0
  %406 = vmatprep.subr.bf16.mxu0 0
  %407 = vmatpush1.bf16.msra.mxu0 0
  %408 = vmatprep.mubr.bf16.mxu0 0
  %409 = vmatmul.mubr.bf16.gmra.mrb[0].mxu0 %v374
  %v410 = vpop.f32.mrb[0].mxu0
  %v411 = vadd.f32 0.0, %v410
  %v412 = vpop.f32.mrb[0].mxu0
  %v413 = vpop.f32.mrb[0].mxu0
  %v414 = vadd.f32 0.0, %v413
  %v415 = vpop.f32.mrb[0].mxu0
  %416 = vdwg.mxu0
  %v417 = vsel %vm225, %v369, 0.0
  %418 = vadd.xlane.f32.xlu0 %v417
  %v419 = vpop.xlane.xlu0 %418
  %v420 = vsel %vm225, %v370, 0.0
  %421 = vadd.xlane.f32.xlu0 %v420
  %v422 = vpop.xlane.xlu0 %421
  %v423 = vmul.f32 %v419, 0.1
  %v424 = vmul.f32 %v422, 0.1
  %v425 = vlaneseq
  %v426 = vshrl.u32 %v425, 7
  %v427 = vsub.s32 4, %v426
  %v428 = vrot.slane %v39, %v427
  %v429 = vmul.f32 %v423, %v428
  %v430 = vmul.f32 %v424, %v428
  %v431 = vlaneseq
  %v432 = vshrl.u32 %v431, 7
  %v433 = vsub.s32 2, %v432
  %v434 = vrot.slane %v39, %v433
  %v435 = vadd.f32 %v429, %v434
  %v436 = vadd.f32 %v430, %v434
  %v437 = vadd.f32 %v411, %v435
  %v438 = vadd.f32 %v414, %v436
  %v439 = vld [vmem:[%s5] sm:$0xff]
  %v440 = vld [vmem:[%s5 + $0x8] sm:$0xf]
  %v441 = vlaneseq
  %v442 = vand.u32 %v441, 127
  %v443 = vlaneseq
  %v444 = vshrl.u32 %v443, 7
  %v445 = vmul.f32 %v39, 0.1
  %v446 = vmax.f32 %v99, 0.0
  %v447 = vpack.c.bf16 %v446, %v446
  %v448 = vpack.c.bf16 %v36, %v35
  %v449 = vpack.c.bf16 %v38, %v37
  %v450 = vlaneseq
  %v451 = vshrl.u32 %v450, 7
  %v452 = vsub.s32 3, %v451
  %v453 = vrot.slane %v39, %v452
  %v455 = vsel %vm121, %v447, 0
  %457 = vmatprep.subr.bf16.mxu0 0
  %458 = vmatpush1.bf16.msra.mxu0 %v448
  %459 = vmatprep.subr.bf16.mxu0 0
  %460 = vmatpush1.bf16.msra.mxu0 %v449
  %461 = vmatprep.subr.bf16.mxu0 0
  %462 = vmatpush1.bf16.msra.mxu0 0
  %463 = vmatprep.subr.bf16.mxu0 0
  %464 = vmatpush1.bf16.msra.mxu0 0
  %465 = vmatprep.subr.bf16.mxu0 0
  %466 = vmatpush1.bf16.msra.mxu0 0
  %467 = vmatprep.subr.bf16.mxu0 0
  %468 = vmatpush1.bf16.msra.mxu0 0
  %469 = vmatprep.subr.bf16.mxu0 0
  %470 = vmatpush1.bf16.msra.mxu0 0
  %471 = vmatprep.subr.bf16.mxu0 0
  %472 = vmatpush1.bf16.msra.mxu0 0
  %473 = vmatprep.subr.bf16.mxu0 0
  %474 = vmatpush1.bf16.msra.mxu0 0
  %475 = vmatprep.subr.bf16.mxu0 0
  %476 = vmatpush1.bf16.msra.mxu0 0
  %477 = vmatprep.subr.bf16.mxu0 0
  %478 = vmatpush1.bf16.msra.mxu0 0
  %479 = vmatprep.subr.bf16.mxu0 0
  %480 = vmatpush1.bf16.msra.mxu0 0
  %481 = vmatprep.subr.bf16.mxu0 0
  %482 = vmatpush1.bf16.msra.mxu0 0
  %483 = vmatprep.subr.bf16.mxu0 0
  %484 = vmatpush1.bf16.msra.mxu0 0
  %485 = vmatprep.subr.bf16.mxu0 0
  %486 = vmatpush1.bf16.msra.mxu0 0
  %487 = vmatprep.subr.bf16.mxu0 0
  %488 = vmatpush1.bf16.msra.mxu0 0
  %489 = vmatprep.mubr.bf16.mxu0 0
  %490 = vmatmul.mubr.bf16.gmra.mrb[0].mxu0 %v455
  %v491 = vpop.f32.mrb[0].mxu0
  %v492 = vadd.f32 %v453, %v491
  %v493 = vpop.f32.mrb[0].mxu0
  %v494 = vpop.f32.mrb[0].mxu0
  %v495 = vpop.f32.mrb[0].mxu0
  %496 = vdwg.mxu0
  %v499 = vunpack.c.l.s4 1966171168
  %v500 = vunpack.c.0.s8 %v499
  %v501 = vlaneseq
  %v502 = vshrl.u32 %v501, 7
  %v503 = vsub.s32 %v500, %v502
  %v504 = vrot.slane %v99, %v503
  %v505 = vcombine.high %v504, %v504
  %v507 = vunpack.c.l.s4 1966171168
  %v508 = vunpack.c.0.s8 %v507
  %v509 = vlaneseq
  %v510 = vshrl.u32 %v509, 7
  %v511 = vsub.s32 %v508, %v510
  %v512 = vrot.slane %v504, %v511
  %v514 = vunpack.c.l.s4 1966171168
  %v515 = vunpack.c.0.s8 %v514
  %v516 = vlaneseq
  %v517 = vshrl.u32 %v516, 7
  %v518 = vsub.s32 %v515, %v517
  %v519 = vrot.slane %v505, %v518
  %v520 = vlaneseq
  %v521 = vshrl.u32 %v520, 7
  %v522 = vsub.s32 0, %v521
  %v523 = vrot.slane %v512, %v522
  %v524 = vlaneseq
  %v525 = vshrl.u32 %v524, 7
  %v526 = vsub.s32 0, %v525
  %v527 = vrot.slane %v519, %v526
  %v530 = vmul.f32 %v437, %v523
  %v531 = vmul.f32 %v438, %v527
  %v532 = vsel %vm121, %v530, 0.0
  %533 = vadd.xlane.f32.xlu0 %v532
  %v534 = vpop.xlane.xlu0 %533
  %v535 = vsel %vm121, %v531, 0.0
  %536 = vadd.xlane.f32.xlu0 %v535
  %v537 = vpop.xlane.xlu0 %536
  %v538 = vmul.f32 %v534, 0.17677669
  %v539 = vmul.f32 %v537, 0.17677669
  %vm540 = vcmp.gt.f32.partialorder %v440, 0.0
  %v543 = vlaneseq
  %v544 = vshrl.u32 %v543, 7
  %v545 = vsub.s32 %v442, %v544
  %v546 = vrot.slane %v538, %v545
  %v547 = vlaneseq
  %v548 = vshrl.u32 %v547, 7
  %v549 = vsub.s32 %v442, %v548
  %v550 = vrot.slane %v539, %v549
  %vm551 = vcmask 1041409
  %v552 = vsel %vm551, %v550, %v546
  %v554 = vsel %vm540, -1e+30, %v552
  %v555 = vadd.f32 %v554, %v439
  %vm556 = vcmask 58368
  %v557 = vsel %vm556, %v555, -inf
  %558 = vmax.index.xlane.f32.xlu0 %v557
  %v559 = vpop.xlane.xlu0 %558
  %v560 = vsub.f32 1.0, %v440
  %vm561 = vcmp.eq.s32.totalorder %v442, %v559
  %v562 = vsel %vm561, 1, 0
  %v563 = vcvt.s32.f32 %v562
  %565 = vset.pattern.permute.xlu0 0
  %566 = vperm.xlu0 %565, %v560
  %v567 = vpop.permute.xlu0 %566
  %v568 = vrot.slane %v567, 2
  %v570 = vmul.f32 %v563, %v568
  %v571 = vlaneseq
  %v572 = vshrl.u32 %v571, 7
  %v573 = vsub.s32 0, %v572
  %v574 = vrot.slane %v559, %v573
  %v575 = vlaneseq
  %v576 = vshrl.u32 %v575, 7
  %v577 = vsub.s32 1, %v576
  %v578 = vrot.slane %v559, %v577
  %vm579 = vcmp.eq.s32.totalorder %v444, %v574
  %vm580 = vcmp.eq.s32.totalorder %v444, %v578
  %v581 = vsel %vm579, 1, 0
  %v582 = vsel %vm580, 1, 0
  %v583 = vcvt.s32.f32 %v581
  %v584 = vcvt.s32.f32 %v582
  %v586 = vunpack.c.l.s4 1966171168
  %v587 = vunpack.c.0.s8 %v586
  %v588 = vlaneseq
  %v589 = vshrl.u32 %v588, 7
  %v590 = vsub.s32 %v587, %v589
  %v591 = vrot.slane %v560, %v590
  %v592 = vcombine.high %v591, %v591
  %v594 = vunpack.c.l.s4 1966171168
  %v595 = vunpack.c.0.s8 %v594
  %v596 = vlaneseq
  %v597 = vshrl.u32 %v596, 7
  %v598 = vsub.s32 %v595, %v597
  %v599 = vrot.slane %v591, %v598
  %v601 = vunpack.c.l.s4 1966171168
  %v602 = vunpack.c.0.s8 %v601
  %v603 = vlaneseq
  %v604 = vshrl.u32 %v603, 7
  %v605 = vsub.s32 %v602, %v604
  %v606 = vrot.slane %v592, %v605
  %v607 = vcombine.high %v599, %v599
  %v608 = vcombine.high %v606, %v606
  %v609 = vlaneseq
  %v610 = vshrl.u32 %v609, 7
  %v611 = vsub.s32 0, %v610
  %v612 = vrot.slane %v607, %v611
  %v613 = vlaneseq
  %v614 = vshrl.u32 %v613, 7
  %v615 = vsub.s32 0, %v614
  %v616 = vrot.slane %v608, %v615
  %v619 = vmul.f32 %v583, %v612
  %v620 = vmul.f32 %v584, %v616
  %v621 = vmax.f32 %v411, 0.0
  %v622 = vmax.f32 %v414, 0.0
  %v623 = vpack.c.bf16 %v622, %v621
  %v625 = vsel %vm121, %v623, 0
  %627 = vmatprep.subr.bf16.mxu0 0
  %628 = vmatpush1.bf16.msra.mxu0 %v40
  %629 = vmatprep.subr.bf16.mxu0 0
  %630 = vmatpush1.bf16.msra.mxu0 %v41
  %631 = vmatprep.subr.bf16.mxu0 0
  %632 = vmatpush1.bf16.msra.mxu0 0
  %633 = vmatprep.subr.bf16.mxu0 0
  %634 = vmatpush1.bf16.msra.mxu0 0
  %635 = vmatprep.subr.bf16.mxu0 0
  %636 = vmatpush1.bf16.msra.mxu0 0
  %637 = vmatprep.subr.bf16.mxu0 0
  %638 = vmatpush1.bf16.msra.mxu0 0
  %639 = vmatprep.subr.bf16.mxu0 0
  %640 = vmatpush1.bf16.msra.mxu0 0
  %641 = vmatprep.subr.bf16.mxu0 0
  %642 = vmatpush1.bf16.msra.mxu0 0
  %643 = vmatprep.subr.bf16.mxu0 0
  %644 = vmatpush1.bf16.msra.mxu0 0
  %645 = vmatprep.subr.bf16.mxu0 0
  %646 = vmatpush1.bf16.msra.mxu0 0
  %647 = vmatprep.subr.bf16.mxu0 0
  %648 = vmatpush1.bf16.msra.mxu0 0
  %649 = vmatprep.subr.bf16.mxu0 0
  %650 = vmatpush1.bf16.msra.mxu0 0
  %651 = vmatprep.subr.bf16.mxu0 0
  %652 = vmatpush1.bf16.msra.mxu0 0
  %653 = vmatprep.subr.bf16.mxu0 0
  %654 = vmatpush1.bf16.msra.mxu0 0
  %655 = vmatprep.subr.bf16.mxu0 0
  %656 = vmatpush1.bf16.msra.mxu0 0
  %657 = vmatprep.subr.bf16.mxu0 0
  %658 = vmatpush1.bf16.msra.mxu0 0
  %659 = vmatprep.mubr.bf16.mxu0 0
  %660 = vmatmul.mubr.bf16.gmra.mrb[0].mxu0 %v625
  %v661 = vpop.f32.mrb[0].mxu0
  %v662 = vadd.f32 0.0, %v661
  %v663 = vpop.f32.mrb[0].mxu0
  %v664 = vpop.f32.mrb[0].mxu0
  %v665 = vadd.f32 0.0, %v664
  %v666 = vpop.f32.mrb[0].mxu0
  %667 = vdwg.mxu0
  %v670 = vunpack.c.l.s4 1966171168
  %v671 = vunpack.c.0.s8 %v670
  %v672 = vlaneseq
  %v673 = vshrl.u32 %v672, 7
  %v674 = vsub.s32 %v671, %v673
  %v675 = vrot.slane %v492, %v674
  %v676 = vcombine.high %v675, %v675
  %v678 = vunpack.c.l.s4 1966171168
  %v679 = vunpack.c.0.s8 %v678
  %v680 = vlaneseq
  %v681 = vshrl.u32 %v680, 7
  %v682 = vsub.s32 %v679, %v681
  %v683 = vrot.slane %v675, %v682
  %v685 = vunpack.c.l.s4 1966171168
  %v686 = vunpack.c.0.s8 %v685
  %v687 = vlaneseq
  %v688 = vshrl.u32 %v687, 7
  %v689 = vsub.s32 %v686, %v688
  %v690 = vrot.slane %v676, %v689
  %v691 = vlaneseq
  %v692 = vshrl.u32 %v691, 7
  %v693 = vsub.s32 0, %v692
  %v694 = vrot.slane %v683, %v693
  %v695 = vlaneseq
  %v696 = vshrl.u32 %v695, 7
  %v697 = vsub.s32 0, %v696
  %v698 = vrot.slane %v690, %v697
  %v701 = vadd.f32 %v662, %v694
  %v702 = vadd.f32 %v665, %v698
  %704 = vset.pattern.permute.xlu0 0
  %705 = vperm.xlu0 %704, %v619
  %v706 = vpop.permute.xlu0 %705
  %709 = vset.pattern.permute.xlu0 0
  %710 = vperm.xlu0 %709, %v620
  %v711 = vpop.permute.xlu0 %710
  %v713 = vmul.f32 %v706, %v701
  %v714 = vmul.f32 %v711, %v702
  %v715 = vadd.f32 %v411, %v713
  %v716 = vadd.f32 %v414, %v714
  %v717 = vlaneseq
  %v718 = vshrl.u32 %v717, 7
  %v719 = vsub.s32 5, %v718
  %v720 = vrot.slane %v445, %v719
  %v721 = vadd.f32 %v701, %v720
  %v722 = vadd.f32 %v702, %v720
  %v723 = vmul.f32 %v706, %v721
  %v724 = vmul.f32 %v711, %v722
  %v725 = vadd.f32 %v437, %v723
  %v726 = vadd.f32 %v438, %v724
  %v727 = vcombine.high %v512, %v512
  %v728 = vcombine.high %v519, %v519
  %v729 = vlaneseq
  %v730 = vshrl.u32 %v729, 7
  %v731 = vsub.s32 0, %v730
  %v732 = vrot.slane %v727, %v731
  %v733 = vlaneseq
  %v734 = vshrl.u32 %v733, 7
  %v735 = vsub.s32 0, %v734
  %v736 = vrot.slane %v728, %v735
  %v739 = vmul.f32 %v725, %v732
  %v740 = vmul.f32 %v726, %v736
  %v741 = vsel %vm121, %v739, 0.0
  %742 = vadd.xlane.f32.xlu0 %v741
  %v743 = vpop.xlane.xlu0 %742
  %v744 = vsel %vm121, %v740, 0.0
  %745 = vadd.xlane.f32.xlu0 %v744
  %v746 = vpop.xlane.xlu0 %745
  %v747 = vmul.f32 %v743, 0.17677669
  %v748 = vmul.f32 %v746, 0.17677669
  %v751 = vlaneseq
  %v752 = vshrl.u32 %v751, 7
  %v753 = vsub.s32 %v442, %v752
  %v754 = vrot.slane %v747, %v753
  %v755 = vlaneseq
  %v756 = vshrl.u32 %v755, 7
  %v757 = vsub.s32 %v442, %v756
  %v758 = vrot.slane %v748, %v757
  %v759 = vsel %vm551, %v758, %v754
  %v761 = vsel %vm540, -1e+30, %v759
  %v763 = vrot.slane %v439, 2
  %v765 = vadd.f32 %v761, %v763
  %v766 = vsel %vm556, %v765, -inf
  %767 = vmax.index.xlane.f32.xlu0 %v766
  %v768 = vpop.xlane.xlu0 %767
  %vm769 = vcmp.eq.s32.totalorder %v442, %v768
  %v770 = vsel %vm769, 1, 0
  %v771 = vcvt.s32.f32 %v770
  %772 = vset.pattern.permute.xlu0 1
  %773 = vperm.xlu0 %772, %v560
  %v774 = vpop.permute.xlu0 %773
  %v775 = vrot.slane %v774, 2
  %v777 = vmul.f32 %v771, %v775
  %v778 = vlaneseq
  %v779 = vshrl.u32 %v778, 7
  %v780 = vsub.s32 0, %v779
  %v781 = vrot.slane %v768, %v780
  %v782 = vlaneseq
  %v783 = vshrl.u32 %v782, 7
  %v784 = vsub.s32 1, %v783
  %v785 = vrot.slane %v768, %v784
  %vm786 = vcmp.eq.s32.totalorder %v444, %v781
  %vm787 = vcmp.eq.s32.totalorder %v444, %v785
  %v788 = vsel %vm786, 1, 0
  %v789 = vsel %vm787, 1, 0
  %v790 = vcvt.s32.f32 %v788
  %v791 = vcvt.s32.f32 %v789
  %v792 = vmul.f32 %v790, %v612
  %v793 = vmul.f32 %v791, %v616
  %v794 = vmax.f32 %v715, 0.0
  %v795 = vmax.f32 %v716, 0.0
  %v796 = vpack.c.bf16 %v795, %v794
  %v798 = vsel %vm121, %v796, 0
  %800 = vmatprep.subr.bf16.mxu0 0
  %801 = vmatpush1.bf16.msra.mxu0 %v40
  %802 = vmatprep.subr.bf16.mxu0 0
  %803 = vmatpush1.bf16.msra.mxu0 %v41
  %804 = vmatprep.subr.bf16.mxu0 0
  %805 = vmatpush1.bf16.msra.mxu0 0
  %806 = vmatprep.subr.bf16.mxu0 0
  %807 = vmatpush1.bf16.msra.mxu0 0
  %808 = vmatprep.subr.bf16.mxu0 0
  %809 = vmatpush1.bf16.msra.mxu0 0
  %810 = vmatprep.subr.bf16.mxu0 0
  %811 = vmatpush1.bf16.msra.mxu0 0
  %812 = vmatprep.subr.bf16.mxu0 0
  %813 = vmatpush1.bf16.msra.mxu0 0
  %814 = vmatprep.subr.bf16.mxu0 0
  %815 = vmatpush1.bf16.msra.mxu0 0
  %816 = vmatprep.subr.bf16.mxu0 0
  %817 = vmatpush1.bf16.msra.mxu0 0
  %818 = vmatprep.subr.bf16.mxu0 0
  %819 = vmatpush1.bf16.msra.mxu0 0
  %820 = vmatprep.subr.bf16.mxu0 0
  %821 = vmatpush1.bf16.msra.mxu0 0
  %822 = vmatprep.subr.bf16.mxu0 0
  %823 = vmatpush1.bf16.msra.mxu0 0
  %824 = vmatprep.subr.bf16.mxu0 0
  %825 = vmatpush1.bf16.msra.mxu0 0
  %826 = vmatprep.subr.bf16.mxu0 0
  %827 = vmatpush1.bf16.msra.mxu0 0
  %828 = vmatprep.subr.bf16.mxu0 0
  %829 = vmatpush1.bf16.msra.mxu0 0
  %830 = vmatprep.subr.bf16.mxu0 0
  %831 = vmatpush1.bf16.msra.mxu0 0
  %832 = vmatprep.mubr.bf16.mxu0 0
  %833 = vmatmul.mubr.bf16.gmra.mrb[0].mxu0 %v798
  %v834 = vpop.f32.mrb[0].mxu0
  %v835 = vadd.f32 0.0, %v834
  %v836 = vpop.f32.mrb[0].mxu0
  %v837 = vpop.f32.mrb[0].mxu0
  %v838 = vadd.f32 0.0, %v837
  %v839 = vpop.f32.mrb[0].mxu0
  %840 = vdwg.mxu0
  %v841 = vcombine.high %v683, %v683
  %v842 = vcombine.high %v690, %v690
  %v843 = vlaneseq
  %v844 = vshrl.u32 %v843, 7
  %v845 = vsub.s32 0, %v844
  %v846 = vrot.slane %v841, %v845
  %v847 = vlaneseq
  %v848 = vshrl.u32 %v847, 7
  %v849 = vsub.s32 0, %v848
  %v850 = vrot.slane %v842, %v849
  %v853 = vadd.f32 %v835, %v846
  %v854 = vadd.f32 %v838, %v850
  %856 = vset.pattern.permute.xlu0 1
  %857 = vperm.xlu0 %856, %v792
  %v858 = vpop.permute.xlu0 %857
  %861 = vset.pattern.permute.xlu0 1
  %862 = vperm.xlu0 %861, %v793
  %v863 = vpop.permute.xlu0 %862
  %v865 = vmul.f32 %v858, %v853
  %v866 = vmul.f32 %v863, %v854
  %v867 = vadd.f32 %v715, %v865
  %v868 = vadd.f32 %v716, %v866
  %v869 = vadd.f32 %v853, %v720
  %v870 = vadd.f32 %v854, %v720
  %v871 = vmul.f32 %v858, %v869
  %v872 = vmul.f32 %v863, %v870
  %v873 = vadd.f32 %v725, %v871
  %v874 = vadd.f32 %v726, %v872
  %v875 = vcombine.high %v99, %v99
  %v877 = vunpack.c.l.s4 1966171168
  %v878 = vunpack.c.0.s8 %v877
  %v879 = vlaneseq
  %v880 = vshrl.u32 %v879, 7
  %v881 = vsub.s32 %v878, %v880
  %v882 = vrot.slane %v875, %v881
  %v883 = vcombine.high %v882, %v882
  %v885 = vunpack.c.l.s4 1966171168
  %v886 = vunpack.c.0.s8 %v885
  %v887 = vlaneseq
  %v888 = vshrl.u32 %v887, 7
  %v889 = vsub.s32 %v886, %v888
  %v890 = vrot.slane %v882, %v889
  %v892 = vunpack.c.l.s4 1966171168
  %v893 = vunpack.c.0.s8 %v892
  %v894 = vlaneseq
  %v895 = vshrl.u32 %v894, 7
  %v896 = vsub.s32 %v893, %v895
  %v897 = vrot.slane %v883, %v896
  %v898 = vlaneseq
  %v899 = vshrl.u32 %v898, 7
  %v900 = vsub.s32 0, %v899
  %v901 = vrot.slane %v890, %v900
  %v902 = vlaneseq
  %v903 = vshrl.u32 %v902, 7
  %v904 = vsub.s32 0, %v903
  %v905 = vrot.slane %v897, %v904
  %v908 = vmul.f32 %v873, %v901
  %v909 = vmul.f32 %v874, %v905
  %v910 = vsel %vm121, %v908, 0.0
  %911 = vadd.xlane.f32.xlu0 %v910
  %v912 = vpop.xlane.xlu0 %911
  %v913 = vsel %vm121, %v909, 0.0
  %914 = vadd.xlane.f32.xlu0 %v913
  %v915 = vpop.xlane.xlu0 %914
  %v916 = vmul.f32 %v912, 0.17677669
  %v917 = vmul.f32 %v915, 0.17677669
  %v920 = vlaneseq
  %v921 = vshrl.u32 %v920, 7
  %v922 = vsub.s32 %v442, %v921
  %v923 = vrot.slane %v916, %v922
  %v924 = vlaneseq
  %v925 = vshrl.u32 %v924, 7
  %v926 = vsub.s32 %v442, %v925
  %v927 = vrot.slane %v917, %v926
  %v928 = vsel %vm551, %v927, %v923
  %v930 = vsel %vm540, -1e+30, %v928
  %v931 = vrot.slane %v439, 4
  %v933 = vadd.f32 %v930, %v931
  %v934 = vsel %vm556, %v933, -inf
  %935 = vmax.index.xlane.f32.xlu0 %v934
  %v936 = vpop.xlane.xlu0 %935
  %vm937 = vcmp.eq.s32.totalorder %v442, %v936
  %v938 = vsel %vm937, 1, 0
  %v939 = vcvt.s32.f32 %v938
  %940 = vset.pattern.permute.xlu0 2
  %941 = vperm.xlu0 %940, %v560
  %v942 = vpop.permute.xlu0 %941
  %v943 = vrot.slane %v942, 2
  %v945 = vmul.f32 %v939, %v943
  %v946 = vlaneseq
  %v947 = vshrl.u32 %v946, 7
  %v948 = vsub.s32 0, %v947
  %v949 = vrot.slane %v936, %v948
  %v950 = vlaneseq
  %v951 = vshrl.u32 %v950, 7
  %v952 = vsub.s32 1, %v951
  %v953 = vrot.slane %v936, %v952
  %vm954 = vcmp.eq.s32.totalorder %v444, %v949
  %vm955 = vcmp.eq.s32.totalorder %v444, %v953
  %v956 = vsel %vm954, 1, 0
  %v957 = vsel %vm955, 1, 0
  %v958 = vcvt.s32.f32 %v956
  %v959 = vcvt.s32.f32 %v957
  %v960 = vmul.f32 %v958, %v612
  %v961 = vmul.f32 %v959, %v616
  %v962 = vmax.f32 %v867, 0.0
  %v963 = vmax.f32 %v868, 0.0
  %v964 = vpack.c.bf16 %v963, %v962
  %v966 = vsel %vm121, %v964, 0
  %968 = vmatprep.subr.bf16.mxu0 0
  %969 = vmatpush1.bf16.msra.mxu0 %v40
  %970 = vmatprep.subr.bf16.mxu0 0
  %971 = vmatpush1.bf16.msra.mxu0 %v41
  %972 = vmatprep.subr.bf16.mxu0 0
  %973 = vmatpush1.bf16.msra.mxu0 0
  %974 = vmatprep.subr.bf16.mxu0 0
  %975 = vmatpush1.bf16.msra.mxu0 0
  %976 = vmatprep.subr.bf16.mxu0 0
  %977 = vmatpush1.bf16.msra.mxu0 0
  %978 = vmatprep.subr.bf16.mxu0 0
  %979 = vmatpush1.bf16.msra.mxu0 0
  %980 = vmatprep.subr.bf16.mxu0 0
  %981 = vmatpush1.bf16.msra.mxu0 0
  %982 = vmatprep.subr.bf16.mxu0 0
  %983 = vmatpush1.bf16.msra.mxu0 0
  %984 = vmatprep.subr.bf16.mxu0 0
  %985 = vmatpush1.bf16.msra.mxu0 0
  %986 = vmatprep.subr.bf16.mxu0 0
  %987 = vmatpush1.bf16.msra.mxu0 0
  %988 = vmatprep.subr.bf16.mxu0 0
  %989 = vmatpush1.bf16.msra.mxu0 0
  %990 = vmatprep.subr.bf16.mxu0 0
  %991 = vmatpush1.bf16.msra.mxu0 0
  %992 = vmatprep.subr.bf16.mxu0 0
  %993 = vmatpush1.bf16.msra.mxu0 0
  %994 = vmatprep.subr.bf16.mxu0 0
  %995 = vmatpush1.bf16.msra.mxu0 0
  %996 = vmatprep.subr.bf16.mxu0 0
  %997 = vmatpush1.bf16.msra.mxu0 0
  %998 = vmatprep.subr.bf16.mxu0 0
  %999 = vmatpush1.bf16.msra.mxu0 0
  %1000 = vmatprep.mubr.bf16.mxu0 0
  %1001 = vmatmul.mubr.bf16.gmra.mrb[0].mxu0 %v966
  %v1002 = vpop.f32.mrb[0].mxu0
  %v1003 = vadd.f32 0.0, %v1002
  %v1004 = vpop.f32.mrb[0].mxu0
  %v1005 = vpop.f32.mrb[0].mxu0
  %v1006 = vadd.f32 0.0, %v1005
  %v1007 = vpop.f32.mrb[0].mxu0
  %1008 = vdwg.mxu0
  %v1009 = vcombine.high %v492, %v492
  %v1011 = vunpack.c.l.s4 1966171168
  %v1012 = vunpack.c.0.s8 %v1011
  %v1013 = vlaneseq
  %v1014 = vshrl.u32 %v1013, 7
  %v1015 = vsub.s32 %v1012, %v1014
  %v1016 = vrot.slane %v1009, %v1015
  %v1017 = vcombine.high %v1016, %v1016
  %v1019 = vunpack.c.l.s4 1966171168
  %v1020 = vunpack.c.0.s8 %v1019
  %v1021 = vlaneseq
  %v1022 = vshrl.u32 %v1021, 7
  %v1023 = vsub.s32 %v1020, %v1022
  %v1024 = vrot.slane %v1016, %v1023
  %v1026 = vunpack.c.l.s4 1966171168
  %v1027 = vunpack.c.0.s8 %v1026
  %v1028 = vlaneseq
  %v1029 = vshrl.u32 %v1028, 7
  %v1030 = vsub.s32 %v1027, %v1029
  %v1031 = vrot.slane %v1017, %v1030
  %v1032 = vlaneseq
  %v1033 = vshrl.u32 %v1032, 7
  %v1034 = vsub.s32 0, %v1033
  %v1035 = vrot.slane %v1024, %v1034
  %v1036 = vlaneseq
  %v1037 = vshrl.u32 %v1036, 7
  %v1038 = vsub.s32 0, %v1037
  %v1039 = vrot.slane %v1031, %v1038
  %v1042 = vadd.f32 %v1003, %v1035
  %v1043 = vadd.f32 %v1006, %v1039
  %v1044 = vadd.f32 %v1042, %v720
  %v1045 = vadd.f32 %v1043, %v720
  %1047 = vset.pattern.permute.xlu0 2
  %1048 = vperm.xlu0 %1047, %v960
  %v1049 = vpop.permute.xlu0 %1048
  %1052 = vset.pattern.permute.xlu0 2
  %1053 = vperm.xlu0 %1052, %v961
  %v1054 = vpop.permute.xlu0 %1053
  %v1056 = vmul.f32 %v1049, %v1044
  %v1057 = vmul.f32 %v1054, %v1045
  %v1058 = vadd.f32 %v873, %v1056
  %v1059 = vadd.f32 %v874, %v1057
  %v1060 = vcombine.high %v890, %v890
  %v1061 = vcombine.high %v897, %v897
  %v1062 = vlaneseq
  %v1063 = vshrl.u32 %v1062, 7
  %v1064 = vsub.s32 0, %v1063
  %v1065 = vrot.slane %v1060, %v1064
  %v1066 = vlaneseq
  %v1067 = vshrl.u32 %v1066, 7
  %v1068 = vsub.s32 0, %v1067
  %v1069 = vrot.slane %v1061, %v1068
  %v1072 = vmul.f32 %v1058, %v1065
  %v1073 = vmul.f32 %v1059, %v1069
  %v1074 = vsel %vm121, %v1072, 0.0
  %1075 = vadd.xlane.f32.xlu0 %v1074
  %v1076 = vpop.xlane.xlu0 %1075
  %v1077 = vsel %vm121, %v1073, 0.0
  %1078 = vadd.xlane.f32.xlu0 %v1077
  %v1079 = vpop.xlane.xlu0 %1078
  %v1080 = vmul.f32 %v1076, 0.17677669
  %v1081 = vmul.f32 %v1079, 0.17677669
  %v1084 = vlaneseq
  %v1085 = vshrl.u32 %v1084, 7
  %v1086 = vsub.s32 %v442, %v1085
  %v1087 = vrot.slane %v1080, %v1086
  %v1088 = vlaneseq
  %v1089 = vshrl.u32 %v1088, 7
  %v1090 = vsub.s32 %v442, %v1089
  %v1091 = vrot.slane %v1081, %v1090
  %v1092 = vsel %vm551, %v1091, %v1087
  %v1094 = vsel %vm540, -1e+30, %v1092
  %v1095 = vrot.slane %v439, 6
  %v1097 = vadd.f32 %v1094, %v1095
  %v1098 = vsel %vm556, %v1097, -inf
  %1099 = vmax.index.xlane.f32.xlu0 %v1098
  %v1100 = vpop.xlane.xlu0 %1099
  %vm1101 = vcmp.eq.s32.totalorder %v442, %v1100
  %v1102 = vsel %vm1101, 1, 0
  %v1103 = vcvt.s32.f32 %v1102
  %1104 = vset.pattern.permute.xlu0 3
  %1105 = vperm.xlu0 %1104, %v560
  %v1106 = vpop.permute.xlu0 %1105
  %v1107 = vrot.slane %v1106, 2
  %v1109 = vmul.f32 %v1103, %v1107
  %1110 = vst.msk [vmem:[%s6] sm:$0x3] %vm556, %v570
  %1111 = vst.msk [vmem:[%s6 + $0x2] sm:$0x3] %vm556, %v777
  %1112 = vst.msk [vmem:[%s6 + $0x4] sm:$0x3] %vm556, %v945
  %1113 = vst.msk [vmem:[%s6 + $0x6] sm:$0x3] %vm556, %v1109
  // Predicated region
  $region26: #{alloc_policy_forward.1} parent=0 // pred_check
    _
  $region27: #{alloc_policy_forward.1} parent=0 // pred_check_branch
    %1115 = sbr.rel (0) target = $region29
  $region28: #{alloc_policy_forward.1} parent=0 // pred_region
    _
  $region29: #{alloc_policy_forward.1} parent=0 // pred_fallthru
    _
  // Predicated region
  $region30: #{alloc_policy_forward.1} parent=0 // pred_check
    _
  $region31: #{alloc_policy_forward.1} parent=0 // pred_check_branch
    %1117 = sbr.rel (0) target = $region33
  $region32: #{alloc_policy_forward.1} parent=0 // pred_region
    _
  $region33: #{alloc_policy_forward.1} parent=0 // pred_fallthru
    _

</llo_original>
